<compile_context>
chip_gen: v5e
topology: v5e:2x2
jax: 0.10.0
libtpu: 0.0.40
codegen_flags: <defaults>
</compile_context>

<pallas_src>
import functools

import jax
import jax.numpy as jnp
from jax.experimental import pallas as pl
from jax.experimental.pallas import tpu as pltpu


def _round_up(x, m):
    return (x + m - 1) // m * m


def _frame_encoder_kernel(
    x_ref,
    w1_ref, b1_ref,
    wpi1_ref, bpi1_ref,
    wpi2_ref, bpi2_ref,
    wtao_ref, btao_ref,
    w2za_ref, b2za_ref,
    out_ref,
    *, block_num: int, c: int,
):
    """One (C, tl) NCL tile; all kernel-size-1 convs fused."""
    x = x_ref[...]                                     # (C, tl) f32

    # Hoist all weight/bias loads out of the unrolled block loop (weights are
    # already bf16; biases stay f32 and broadcast over lanes).
    w1 = w1_ref[...]
    wpi1 = wpi1_ref[...]
    wpi2 = wpi2_ref[...]
    wtao = wtao_ref[...]
    w2za = w2za_ref[...]
    b1 = b1_ref[...]
    bpi1 = bpi1_ref[...]
    bpi2 = bpi2_ref[...]
    btao = btao_ref[...]
    b2za = b2za_ref[...]

    def mm(w, v, b):
        # bf16 MXU matmul with f32 accumulation; bias add stays f32.
        return jnp.dot(w, v, preferred_element_type=jnp.float32) + b

    # h = conv1(x)
    h = mm(w1, x.astype(jnp.bfloat16), b1)             # (C, tl) f32

    # Gated residual blocks (block_num is a static Python int -> unrolled).
    # enc_tao(h) and enc_pi1(relu(h)) have *different* RHS (relu in between),
    # so they are not fused into one matmul.
    # TODO(synk): on v6e/v7x (2x256^2 MXU), if a bundle dump shows the MXU
    # slot saturated, fuse them via a block-diagonal [[wpi1,0],[0,wtao]]
    # weight against a stacked [relu(h); h] RHS; skip on v5e (4x128^2 MXU).
    for _ in range(block_num):
        h_bf = h.astype(jnp.bfloat16)                  # one cast per block
        pi = jax.nn.relu(h_bf)                         # relu commutes w/ cast
        pi = mm(wpi1, pi, bpi1)                        # (C//2, tl) f32
        pi = jax.nn.relu(pi).astype(jnp.bfloat16)
        pi = mm(wpi2, pi, bpi2)                        # (C, tl) f32
        tau = jax.nn.sigmoid(mm(wtao, h_bf, btao))     # (C, tl) f32
        h = h + tau * (pi - h)                         # == h*(1-tau)+pi*tau

    # Fused epilogue: conv2 and conv_z_attention share RHS h.
    zz = mm(w2za, h.astype(jnp.bfloat16), b2za)        # (2C, tl) f32
    z = zz[:c, :]
    z_att = jax.nn.sigmoid(zz[c:, :])
    out_ref[...] = (z * z_att).astype(out_ref.dtype)


def frame_encoder_pallas(x, params, block_num, *, tl=2048):
    """x: (B, C, L) float32 (PyTorch Conv1d NCL layout).  Returns (B, C, L)."""
    B, C, L = x.shape
    half = C // 2

    # Lane tile over positions (tuning knob).  Capped at L rounded up to a
    # lane multiple; L is zero-padded to a tile multiple only when needed
    # (no-op for typical L; padded positions never affect real outputs since
    # every op is per-position).
    tl = max(128, min(tl, _round_up(L, 128)))
    nt = pl.cdiv(L, tl)
    L_pad = nt * tl
    if L_pad != L:
        x = jnp.pad(x, ((0, 0), (0, 0), (0, L_pad - L)))

    bf = jnp.bfloat16
    f32 = jnp.float32
    w1 = params["w1"].astype(bf)
    wpi1 = params["wpi1"].astype(bf)
    wpi2 = params["wpi2"].astype(bf)
    wtao = params["wtao"].astype(bf)
    # conv2 | conv_z_attention fused along the output-channel (sublane) axis.
    w2za = jnp.concatenate([params["w2"], params["wza"]], axis=0).astype(bf)
    b2za = jnp.concatenate([params["b2"], params["bza"]], axis=0).astype(f32)
    b1 = params["b1"].astype(f32)
    bpi1 = params["bpi1"].astype(f32)
    bpi2 = params["bpi2"].astype(f32)
    btao = params["btao"].astype(f32)

    kernel = functools.partial(_frame_encoder_kernel, block_num=block_num, c=C)
    args = (x, w1, b1, wpi1, bpi1, wpi2, bpi2, wtao, btao, w2za, b2za)
    grid = (B, nt)

    def run(weight_pipeline_mode):
        spec_kw = ({} if weight_pipeline_mode is None
                   else {"pipeline_mode": weight_pipeline_mode})

        def act_spec():
            # Activations: one (C, tl) NCL tile per grid step (batch dim
            # squeezed), streamed with default double-buffering.
            return pl.BlockSpec((None, C, tl), lambda b, l: (b, 0, l))

        def const_spec(shape):
            # Constant index_map: weights/biases never change across the grid.
            return pl.BlockSpec(shape, lambda b, l: (0, 0), **spec_kw)

        in_specs = [
            act_spec(),                                        # x
            const_spec((C, C)), const_spec((C, 1)),            # conv1
            const_spec((half, C)), const_spec((half, 1)),      # enc_pi1
            const_spec((C, half)), const_spec((C, 1)),         # enc_pi2
            const_spec((C, C)), const_spec((C, 1)),            # enc_tao
            const_spec((2 * C, C)), const_spec((2 * C, 1)),    # conv2|z_att
        ]

        return pl.pallas_call(
            kernel,
            out_shape=jax.ShapeDtypeStruct((B, C, L_pad), jnp.float32),
            grid_spec=pltpu.PrefetchScalarGridSpec(
                num_scalar_prefetch=0,
                grid=grid,
                in_specs=in_specs,
                out_specs=act_spec(),
            ),
            compiler_params=pltpu.CompilerParams(
                dimension_semantics=("parallel", "parallel"),
                vmem_limit_bytes=32 * 1024 * 1024,
            ),
        )(*args)

    try:
        # Weights/biases never change across grid steps -> single buffer.
        out = run(pl.Buffered(1))
    except (TypeError, pltpu.LoweringException):
        # Narrow fallback for jax versions without BlockSpec pipeline_mode
        # support; genuine runtime/shape errors are NOT swallowed.
        out = run(None)

    return out[:, :, :L] if L_pad != L else out


def init_params(key, input_dim):
    """Deterministic synthetic weights in PyTorch Conv1d form.

    Conv1d(kernel_size=1) weight has shape (C_out, C_in, 1); we store the
    squeezed (C_out, C_in) matrix and bias as (C_out, 1).
    """
    C = input_dim
    half = C // 2
    ks = jax.random.split(key, 12)

    def w(k, cout, cin):
        return jax.random.normal(k, (cout, cin), jnp.float32) / jnp.sqrt(cin)

    def b(k, cout):
        return jax.random.normal(k, (cout, 1), jnp.float32) * 0.01

    return {
        "w1":   w(ks[0], C, C),      "b1":   b(ks[1], C),
        "wpi1": w(ks[2], half, C),   "bpi1": b(ks[3], half),
        "wpi2": w(ks[4], C, half),   "bpi2": b(ks[5], C),
        "wtao": w(ks[6], C, C),      "btao": b(ks[7], C),
        "w2":   w(ks[8], C, C),      "b2":   b(ks[9], C),
        "wza":  w(ks[10], C, C),     "bza":  b(ks[11], C),
    }


def frame_encoder_ref(x, params, block_num):
    """Pure-JAX f32 reference with the original module's semantics."""
    def conv(v, w, bias):  # v (B, Cin, L), w (Cout, Cin), bias (Cout, 1)
        return jnp.einsum("oc,bcl->bol", w, v) + bias[None, :, :]

    h = conv(x, params["w1"], params["b1"])
    for _ in range(block_num):
        pi = jax.nn.relu(h)
        pi = conv(pi, params["wpi1"], params["bpi1"])
        pi = jax.nn.relu(pi)
        pi = conv(pi, params["wpi2"], params["bpi2"])
        tau = jax.nn.sigmoid(conv(h, params["wtao"], params["btao"]))
        h = h * (1.0 - tau) + pi * tau
    z = conv(h, params["w2"], params["b2"])
    z_att = jax.nn.sigmoid(conv(h, params["wza"], params["bza"]))
    return z * z_att


if __name__ == "__main__":
    B, C, L = 2, 32, 256      # batch, input_dim (channels), sequence length
    block_num = 2

    key = jax.random.PRNGKey(0)
    kx, kp = jax.random.split(key)
    x = jax.random.normal(kx, (B, C, L), jnp.float32)
    params = init_params(kp, C)

    out = jax.block_until_ready(frame_encoder_pallas(x, params, block_num))
    ref = frame_encoder_ref(x, params, block_num)

    assert out.shape == (B, C, L)
    # bf16 MXU matmuls (f32 accumulation) vs. the pure-f32 reference: loosen
    # the tolerance accordingly.
    max_err = float(jnp.max(jnp.abs(out - ref)))
    assert jnp.allclose(out, ref, atol=5e-2, rtol=5e-2), max_err
    print("KERNEL_OK")
</pallas_src>

<mosaic_0001>
module attributes {stable_mosaic.version = 11 : i64} {
  func.func @_frame_encoder_kernel(%arg0: i32, %arg1: i32, %arg2: memref<1x32x256xf32, #tpu.memory_space<vmem>>, %arg3: memref<32x32xbf16, #tpu.memory_space<vmem>>, %arg4: memref<32x1xf32, #tpu.memory_space<vmem>>, %arg5: memref<16x32xbf16, #tpu.memory_space<vmem>>, %arg6: memref<16x1xf32, #tpu.memory_space<vmem>>, %arg7: memref<32x16xbf16, #tpu.memory_space<vmem>>, %arg8: memref<32x1xf32, #tpu.memory_space<vmem>>, %arg9: memref<32x32xbf16, #tpu.memory_space<vmem>>, %arg10: memref<32x1xf32, #tpu.memory_space<vmem>>, %arg11: memref<64x32xbf16, #tpu.memory_space<vmem>>, %arg12: memref<64x1xf32, #tpu.memory_space<vmem>>, %arg13: memref<1x32x256xf32, #tpu.memory_space<vmem>>) attributes {dimension_semantics = [#tpu.dimension_semantics<parallel>, #tpu.dimension_semantics<parallel>], iteration_bounds = array<i64: 2, 1>, scalar_prefetch = 0 : i64, scratch_operands = 0 : i64, tpu.core_type = #tpu.core_type<tc>, window_params = [{transform_indices = @transform_0, window_bounds = array<i64: 1, 32, 256>}, {pipeline_mode = #tpu.pipeline_mode<synchronous>, transform_indices = @transform_1, window_bounds = array<i64: 32, 32>}, {pipeline_mode = #tpu.pipeline_mode<synchronous>, transform_indices = @transform_2, window_bounds = array<i64: 32, 1>}, {pipeline_mode = #tpu.pipeline_mode<synchronous>, transform_indices = @transform_3, window_bounds = array<i64: 16, 32>}, {pipeline_mode = #tpu.pipeline_mode<synchronous>, transform_indices = @transform_4, window_bounds = array<i64: 16, 1>}, {pipeline_mode = #tpu.pipeline_mode<synchronous>, transform_indices = @transform_5, window_bounds = array<i64: 32, 16>}, {pipeline_mode = #tpu.pipeline_mode<synchronous>, transform_indices = @transform_6, window_bounds = array<i64: 32, 1>}, {pipeline_mode = #tpu.pipeline_mode<synchronous>, transform_indices = @transform_7, window_bounds = array<i64: 32, 32>}, {pipeline_mode = #tpu.pipeline_mode<synchronous>, transform_indices = @transform_8, window_bounds = array<i64: 32, 1>}, {pipeline_mode = #tpu.pipeline_mode<synchronous>, transform_indices = @transform_9, window_bounds = array<i64: 64, 32>}, {pipeline_mode = #tpu.pipeline_mode<synchronous>, transform_indices = @transform_10, window_bounds = array<i64: 64, 1>}, {transform_indices = @transform_11, window_bounds = array<i64: 1, 32, 256>}]} {
    %c0 = arith.constant 0 : index
    %c0_0 = arith.constant 0 : index
    %c0_1 = arith.constant 0 : index
    %0 = vector.load %arg2[%c0, %c0_0, %c0_1] : memref<1x32x256xf32, #tpu.memory_space<vmem>>, vector<1x32x256xf32>
    %1 = vector.shape_cast %0 : vector<1x32x256xf32> to vector<32x256xf32>
    %c0_2 = arith.constant 0 : index
    %c0_3 = arith.constant 0 : index
    %2 = vector.load %arg3[%c0_2, %c0_3] : memref<32x32xbf16, #tpu.memory_space<vmem>>, vector<32x32xbf16>
    %c0_4 = arith.constant 0 : index
    %c0_5 = arith.constant 0 : index
    %3 = vector.load %arg5[%c0_4, %c0_5] : memref<16x32xbf16, #tpu.memory_space<vmem>>, vector<16x32xbf16>
    %c0_6 = arith.constant 0 : index
    %c0_7 = arith.constant 0 : index
    %4 = vector.load %arg7[%c0_6, %c0_7] : memref<32x16xbf16, #tpu.memory_space<vmem>>, vector<32x16xbf16>
    %c0_8 = arith.constant 0 : index
    %c0_9 = arith.constant 0 : index
    %5 = vector.load %arg9[%c0_8, %c0_9] : memref<32x32xbf16, #tpu.memory_space<vmem>>, vector<32x32xbf16>
    %c0_10 = arith.constant 0 : index
    %c0_11 = arith.constant 0 : index
    %6 = vector.load %arg11[%c0_10, %c0_11] : memref<64x32xbf16, #tpu.memory_space<vmem>>, vector<64x32xbf16>
    %c0_12 = arith.constant 0 : index
    %c0_13 = arith.constant 0 : index
    %7 = vector.load %arg4[%c0_12, %c0_13] : memref<32x1xf32, #tpu.memory_space<vmem>>, vector<32x1xf32>
    %c0_14 = arith.constant 0 : index
    %c0_15 = arith.constant 0 : index
    %8 = vector.load %arg6[%c0_14, %c0_15] : memref<16x1xf32, #tpu.memory_space<vmem>>, vector<16x1xf32>
    %c0_16 = arith.constant 0 : index
    %c0_17 = arith.constant 0 : index
    %9 = vector.load %arg8[%c0_16, %c0_17] : memref<32x1xf32, #tpu.memory_space<vmem>>, vector<32x1xf32>
    %c0_18 = arith.constant 0 : index
    %c0_19 = arith.constant 0 : index
    %10 = vector.load %arg10[%c0_18, %c0_19] : memref<32x1xf32, #tpu.memory_space<vmem>>, vector<32x1xf32>
    %c0_20 = arith.constant 0 : index
    %c0_21 = arith.constant 0 : index
    %11 = vector.load %arg12[%c0_20, %c0_21] : memref<64x1xf32, #tpu.memory_space<vmem>>, vector<64x1xf32>
    %12 = arith.truncf %1 : vector<32x256xf32> to vector<32x256xbf16>
    %cst = arith.constant dense<0.000000e+00> : vector<32x256xf32>
    %13 = tpu.matmul %2, %12, %cst {dimension_numbers = #tpu.dot_dimension_numbers<[1], [0], [0], [1], [0, 0, 1, 1], [], []>} : vector<32x32xbf16>, vector<32x256xbf16>, vector<32x256xf32> -> vector<32x256xf32>
    %14 = vector.broadcast %7 : vector<32x1xf32> to vector<32x256xf32>
    %15 = arith.addf %13, %14 : vector<32x256xf32>
    %16 = arith.truncf %15 : vector<32x256xf32> to vector<32x256xbf16>
    %cst_22 = arith.constant 0.000000e+00 : bf16
    %17 = vector.broadcast %cst_22 : bf16 to vector<32x256xbf16>
    %18 = arith.maximumf %16, %17 : vector<32x256xbf16>
    %cst_23 = arith.constant dense<0.000000e+00> : vector<16x256xf32>
    %19 = tpu.matmul %3, %18, %cst_23 {dimension_numbers = #tpu.dot_dimension_numbers<[1], [0], [0], [1], [0, 0, 1, 1], [], []>} : vector<16x32xbf16>, vector<32x256xbf16>, vector<16x256xf32> -> vector<16x256xf32>
    %20 = vector.broadcast %8 : vector<16x1xf32> to vector<16x256xf32>
    %21 = arith.addf %19, %20 : vector<16x256xf32>
    %cst_24 = arith.constant 0.000000e+00 : f32
    %22 = vector.broadcast %cst_24 : f32 to vector<16x256xf32>
    %23 = arith.maximumf %21, %22 : vector<16x256xf32>
    %24 = arith.truncf %23 : vector<16x256xf32> to vector<16x256xbf16>
    %cst_25 = arith.constant dense<0.000000e+00> : vector<32x256xf32>
    %25 = tpu.matmul %4, %24, %cst_25 {dimension_numbers = #tpu.dot_dimension_numbers<[1], [0], [0], [1], [0, 0, 1, 1], [], []>} : vector<32x16xbf16>, vector<16x256xbf16>, vector<32x256xf32> -> vector<32x256xf32>
    %26 = vector.broadcast %9 : vector<32x1xf32> to vector<32x256xf32>
    %27 = arith.addf %25, %26 : vector<32x256xf32>
    %cst_26 = arith.constant dense<0.000000e+00> : vector<32x256xf32>
    %28 = tpu.matmul %5, %16, %cst_26 {dimension_numbers = #tpu.dot_dimension_numbers<[1], [0], [0], [1], [0, 0, 1, 1], [], []>} : vector<32x32xbf16>, vector<32x256xbf16>, vector<32x256xf32> -> vector<32x256xf32>
    %29 = vector.broadcast %10 : vector<32x1xf32> to vector<32x256xf32>
    %30 = arith.addf %28, %29 : vector<32x256xf32>
    %31 = arith.negf %30 : vector<32x256xf32>
    %32 = math.exp %31 : vector<32x256xf32>
    %cst_27 = arith.constant 1.000000e+00 : f32
    %33 = vector.broadcast %cst_27 : f32 to vector<32x256xf32>
    %34 = arith.addf %33, %32 : vector<32x256xf32>
    %35 = arith.divf %33, %34 : vector<32x256xf32>
    %36 = arith.subf %27, %15 : vector<32x256xf32>
    %37 = arith.mulf %35, %36 : vector<32x256xf32>
    %38 = arith.addf %15, %37 : vector<32x256xf32>
    %39 = arith.truncf %38 : vector<32x256xf32> to vector<32x256xbf16>
    %cst_28 = arith.constant 0.000000e+00 : bf16
    %40 = vector.broadcast %cst_28 : bf16 to vector<32x256xbf16>
    %41 = arith.maximumf %39, %40 : vector<32x256xbf16>
    %cst_29 = arith.constant dense<0.000000e+00> : vector<16x256xf32>
    %42 = tpu.matmul %3, %41, %cst_29 {dimension_numbers = #tpu.dot_dimension_numbers<[1], [0], [0], [1], [0, 0, 1, 1], [], []>} : vector<16x32xbf16>, vector<32x256xbf16>, vector<16x256xf32> -> vector<16x256xf32>
    %43 = vector.broadcast %8 : vector<16x1xf32> to vector<16x256xf32>
    %44 = arith.addf %42, %43 : vector<16x256xf32>
    %cst_30 = arith.constant 0.000000e+00 : f32
    %45 = vector.broadcast %cst_30 : f32 to vector<16x256xf32>
    %46 = arith.maximumf %44, %45 : vector<16x256xf32>
    %47 = arith.truncf %46 : vector<16x256xf32> to vector<16x256xbf16>
    %cst_31 = arith.constant dense<0.000000e+00> : vector<32x256xf32>
    %48 = tpu.matmul %4, %47, %cst_31 {dimension_numbers = #tpu.dot_dimension_numbers<[1], [0], [0], [1], [0, 0, 1, 1], [], []>} : vector<32x16xbf16>, vector<16x256xbf16>, vector<32x256xf32> -> vector<32x256xf32>
    %49 = vector.broadcast %9 : vector<32x1xf32> to vector<32x256xf32>
    %50 = arith.addf %48, %49 : vector<32x256xf32>
    %cst_32 = arith.constant dense<0.000000e+00> : vector<32x256xf32>
    %51 = tpu.matmul %5, %39, %cst_32 {dimension_numbers = #tpu.dot_dimension_numbers<[1], [0], [0], [1], [0, 0, 1, 1], [], []>} : vector<32x32xbf16>, vector<32x256xbf16>, vector<32x256xf32> -> vector<32x256xf32>
    %52 = vector.broadcast %10 : vector<32x1xf32> to vector<32x256xf32>
    %53 = arith.addf %51, %52 : vector<32x256xf32>
    %54 = arith.negf %53 : vector<32x256xf32>
    %55 = math.exp %54 : vector<32x256xf32>
    %cst_33 = arith.constant 1.000000e+00 : f32
    %56 = vector.broadcast %cst_33 : f32 to vector<32x256xf32>
    %57 = arith.addf %56, %55 : vector<32x256xf32>
    %58 = arith.divf %56, %57 : vector<32x256xf32>
    %59 = arith.subf %50, %38 : vector<32x256xf32>
    %60 = arith.mulf %58, %59 : vector<32x256xf32>
    %61 = arith.addf %38, %60 : vector<32x256xf32>
    %62 = arith.truncf %61 : vector<32x256xf32> to vector<32x256xbf16>
    %cst_34 = arith.constant dense<0.000000e+00> : vector<64x256xf32>
    %63 = tpu.matmul %6, %62, %cst_34 {dimension_numbers = #tpu.dot_dimension_numbers<[1], [0], [0], [1], [0, 0, 1, 1], [], []>} : vector<64x32xbf16>, vector<32x256xbf16>, vector<64x256xf32> -> vector<64x256xf32>
    %64 = vector.broadcast %11 : vector<64x1xf32> to vector<64x256xf32>
    %65 = arith.addf %63, %64 : vector<64x256xf32>
    %66 = vector.extract_strided_slice %65 {offsets = [0, 0], sizes = [32, 256], strides = [1, 1]} : vector<64x256xf32> to vector<32x256xf32>
    %67 = vector.extract_strided_slice %65 {offsets = [32, 0], sizes = [32, 256], strides = [1, 1]} : vector<64x256xf32> to vector<32x256xf32>
    %68 = arith.negf %67 : vector<32x256xf32>
    %69 = math.exp %68 : vector<32x256xf32>
    %cst_35 = arith.constant 1.000000e+00 : f32
    %70 = vector.broadcast %cst_35 : f32 to vector<32x256xf32>
    %71 = arith.addf %70, %69 : vector<32x256xf32>
    %72 = arith.divf %70, %71 : vector<32x256xf32>
    %73 = arith.mulf %66, %72 : vector<32x256xf32>
    %c0_36 = arith.constant 0 : index
    %c0_37 = arith.constant 0 : index
    %c0_38 = arith.constant 0 : index
    %74 = vector.load %arg13[%c0_36, %c0_37, %c0_38] : memref<1x32x256xf32, #tpu.memory_space<vmem>>, vector<1x32x256xf32>
    %75 = vector.shape_cast %74 : vector<1x32x256xf32> to vector<32x256xf32>
    %76 = vector.shape_cast %73 : vector<32x256xf32> to vector<1x32x256xf32>
    tpu.vector_store %arg13[%c0_36, %c0_37, %c0_38], %76 {strides = array<i32>} : memref<1x32x256xf32, #tpu.memory_space<vmem>>, vector<1x32x256xf32>,
    return
  }
  func.func @transform_0(%arg0: i32, %arg1: i32) -> (i32, i32, i32) {
    %c0_i32 = arith.constant 0 : i32
    %c0_i32_0 = arith.constant 0 : i32
    return %arg0, %c0_i32, %arg1 : i32, i32, i32
  }
  func.func @transform_1(%arg0: i32, %arg1: i32) -> (i32, i32) {
    %c0_i32 = arith.constant 0 : i32
    %c0_i32_0 = arith.constant 0 : i32
    %c0_i32_1 = arith.constant 0 : i32
    return %c0_i32, %c0_i32_0 : i32, i32
  }
  func.func @transform_2(%arg0: i32, %arg1: i32) -> (i32, i32) {
    %c0_i32 = arith.constant 0 : i32
    %c0_i32_0 = arith.constant 0 : i32
    %c0_i32_1 = arith.constant 0 : i32
    return %c0_i32, %c0_i32_0 : i32, i32
  }
  func.func @transform_3(%arg0: i32, %arg1: i32) -> (i32, i32) {
    %c0_i32 = arith.constant 0 : i32
    %c0_i32_0 = arith.constant 0 : i32
    %c0_i32_1 = arith.constant 0 : i32
    return %c0_i32, %c0_i32_0 : i32, i32
  }
  func.func @transform_4(%arg0: i32, %arg1: i32) -> (i32, i32) {
    %c0_i32 = arith.constant 0 : i32
    %c0_i32_0 = arith.constant 0 : i32
    %c0_i32_1 = arith.constant 0 : i32
    return %c0_i32, %c0_i32_0 : i32, i32
  }
  func.func @transform_5(%arg0: i32, %arg1: i32) -> (i32, i32) {
    %c0_i32 = arith.constant 0 : i32
    %c0_i32_0 = arith.constant 0 : i32
    %c0_i32_1 = arith.constant 0 : i32
    return %c0_i32, %c0_i32_0 : i32, i32
  }
  func.func @transform_6(%arg0: i32, %arg1: i32) -> (i32, i32) {
    %c0_i32 = arith.constant 0 : i32
    %c0_i32_0 = arith.constant 0 : i32
    %c0_i32_1 = arith.constant 0 : i32
    return %c0_i32, %c0_i32_0 : i32, i32
  }
  func.func @transform_7(%arg0: i32, %arg1: i32) -> (i32, i32) {
    %c0_i32 = arith.constant 0 : i32
    %c0_i32_0 = arith.constant 0 : i32
    %c0_i32_1 = arith.constant 0 : i32
    return %c0_i32, %c0_i32_0 : i32, i32
  }
  func.func @transform_8(%arg0: i32, %arg1: i32) -> (i32, i32) {
    %c0_i32 = arith.constant 0 : i32
    %c0_i32_0 = arith.constant 0 : i32
    %c0_i32_1 = arith.constant 0 : i32
    return %c0_i32, %c0_i32_0 : i32, i32
  }
  func.func @transform_9(%arg0: i32, %arg1: i32) -> (i32, i32) {
    %c0_i32 = arith.constant 0 : i32
    %c0_i32_0 = arith.constant 0 : i32
    %c0_i32_1 = arith.constant 0 : i32
    return %c0_i32, %c0_i32_0 : i32, i32
  }
  func.func @transform_10(%arg0: i32, %arg1: i32) -> (i32, i32) {
    %c0_i32 = arith.constant 0 : i32
    %c0_i32_0 = arith.constant 0 : i32
    %c0_i32_1 = arith.constant 0 : i32
    return %c0_i32, %c0_i32_0 : i32, i32
  }
  func.func @transform_11(%arg0: i32, %arg1: i32) -> (i32, i32, i32) {
    %c0_i32 = arith.constant 0 : i32
    %c0_i32_0 = arith.constant 0 : i32
    return %arg0, %c0_i32, %arg1 : i32, i32, i32
  }
}

</mosaic_0001>

<llo_original>
// kernel: tpu_custom_call.1
$region0: #{tpu_custom_call.1}
  #allocation0 [shape = 'u32[]', space=smem, size = 0x4, offset = 0x4, fixed_abs, tag = 'smem constant byte address 0x4 - core index']
  #allocation1 [shape = 'u32[72,128]{1,0:T(1,128)}', space=vmem, size = 0x9000, scoped, tag = 'internal scratch']
  %s0 = inlined_call_operand.hbm [shape: f32[2,32,256], index: 0, kind: input, shape index: {}]
  %s1 = inlined_call_operand.vmem [shape: bf16[32,32], index: 1, kind: input, shape index: {}]
  %s2 = inlined_call_operand.vmem [shape: f32[32,1], index: 2, kind: input, shape index: {}]
  %s3 = inlined_call_operand.vmem [shape: bf16[16,32], index: 3, kind: input, shape index: {}]
  %s4 = inlined_call_operand.vmem [shape: f32[16,1], index: 4, kind: input, shape index: {}]
  %s5 = inlined_call_operand.vmem [shape: bf16[32,16], index: 5, kind: input, shape index: {}]
  %s6 = inlined_call_operand.vmem [shape: f32[32,1], index: 6, kind: input, shape index: {}]
  %s7 = inlined_call_operand.vmem [shape: bf16[32,32], index: 7, kind: input, shape index: {}]
  %s8 = inlined_call_operand.vmem [shape: f32[32,1], index: 8, kind: input, shape index: {}]
  %s9 = inlined_call_operand.vmem [shape: bf16[64,32], index: 9, kind: input, shape index: {}]
  %s10 = inlined_call_operand.vmem [shape: f32[64,1], index: 10, kind: input, shape index: {}]
  %s11 = inlined_call_operand.hbm [shape: f32[2,32,256], index: 11, kind: output, shape index: {}]
  %s12 = sld [smem:[#allocation0]]
  $region81: #{tpu_custom_call.1} parent=0
    _
  %s14 = ssub.s32 1, %s12
  %s15 = scalar_select 0, %s14, %s12
  $region1: #{tpu_custom_call.1} parent=0
    #allocation2 [shape = 'u8[65536]{0}', space=vmem, size = 0x10000, scoped, tag = 'input window, operand 0']
    #allocation3 [shape = 's32[2]{0}', space=sflag, size = 0x8, scoped, tag = 'scoped memory for tpu_custom_call.1']
    #allocation4 [shape = 's32[2]{0}', space=sflag, size = 0x8, scoped, tag = 'scoped memory for tpu_custom_call.1']
    #allocation5 [shape = 'u8[65536]{0}', space=vmem, size = 0x10000, scoped, tag = 'output window, operand 0']
    %16 = vsyncpa [#allocation3], 0
    %s17 = scalar_lea.sflag [#allocation3], 1
    %18 = vsyncpa %s17, 0
    %19 = vsyncpa [#allocation4], 0
    %s20 = scalar_lea.sflag [#allocation4], 1
    %21 = vsyncpa %s20, 0
    loop: start=0, step=1, limit=4
    $region2: #{tpu_custom_call.1} parent=1 // loop_pre_header
      _
    $region3: #{tpu_custom_call.1} parent=1 // loop_header
      %s23 = sphi 0, %s27
      %p24 = scmp.ge.s32.totalorder %s23, 4
      %s30 = sphi 0, %s42
      %s31 = sphi 0, %s38
      %s32 = sphi 0, %s30
      %s33 = sphi 0, %s31
      %s34 = sphi 0, %s32
      %s35 = sphi 0, %s33
      %s47 = sphi 0, %s49
      %s50 = sphi 0, %s47
      %s51 = sphi 0, %s50
      %s67 = sphi 0, %s51
      %s71 = sphi 0, %s71
      %s73 = sphi 0, %s71
      %s74 = sphi 0, %s73
      %s88 = sphi 0, %s74
      %s92 = sphi 0, %s92
      %s94 = sphi 0, %s92
      %s95 = sphi 0, %s94
      %s109 = sphi 0, %s95
      %s113 = sphi 0, %s113
      %s115 = sphi 0, %s113
      %s116 = sphi 0, %s115
      %s130 = sphi 0, %s116
      %s134 = sphi 0, %s134
      %s136 = sphi 0, %s134
      %s137 = sphi 0, %s136
      %s151 = sphi 0, %s137
      %s155 = sphi 0, %s155
      %s157 = sphi 0, %s155
      %s158 = sphi 0, %s157
      %s172 = sphi 0, %s158
      %s176 = sphi 0, %s176
      %s178 = sphi 0, %s176
      %s179 = sphi 0, %s178
      %s193 = sphi 0, %s179
      %s197 = sphi 0, %s197
      %s199 = sphi 0, %s197
      %s200 = sphi 0, %s199
      %s214 = sphi 0, %s200
      %s218 = sphi 0, %s218
      %s220 = sphi 0, %s218
      %s221 = sphi 0, %s220
      %s235 = sphi 0, %s221
      %s239 = sphi 0, %s239
      %s241 = sphi 0, %s239
      %s242 = sphi 0, %s241
      %s256 = sphi 0, %s242
      %s260 = sphi 0, %s260
      %s262 = sphi 0, %s260
      %s263 = sphi 0, %s262
      %s277 = sphi 0, %s263
      %s285 = sphi 0, %s287
      %s288 = sphi 0, %s285
      %s289 = sphi 0, %s288
      %s305 = sphi 0, %s289
    $region4: #{tpu_custom_call.1} parent=1 // loop_header_branch
      %26 = sbr.rel (%p24) target = $region8
    $region5: #{tpu_custom_call.1} parent=1 // loop_body
      %s28 = ssub.s32 %s23, 1
      %s29 = ssub.s32 %s23, 2
      %s36 = sadd.s32 1, %s31
      %p37 = scmp.ge.s32.totalorder %s36, 1
      %s38 = scalar_select %p37, 0, %s36
      %s39 = sadd.s32 1, %s30
      %s40 = scalar_select %p37, %s39, %s30
      %p41 = scmp.ge.s32.totalorder %s40, 2
      %s42 = scalar_select %p41, 0, %s40
      %s43 = ssub.s32 %s30, %s42
      %s44 = ssub.s32 %s31, %s38
      %s45 = sor.u32 %s43, %s44
      %p46 = scmp.eq.s32.totalorder %s45, 0
      %s48 = sadd.s32 %s47, 1
      %s49 = scalar_select %p46, %s47, %s48
      %p52 = pneg %p46
      %p53 = scmp.eq.s32.totalorder %s23, 1
      %p54 = por %p52, %p53
      %p55 = scmp.ne.s32.totalorder %s47, %s50
      %p56 = scmp.eq.s32.totalorder %s23, 0
      %p57 = por %p55, %p56
      %p58 = scmp.ne.s32.totalorder %s47, %s50
      %p59 = scmp.eq.s32.totalorder %s28, 1
      %p60 = por %p58, %p59
      %p61 = scmp.ne.s32.totalorder %s50, %s51
      %p62 = scmp.eq.s32.totalorder %s28, 0
      %p63 = por %p61, %p62
      %p64 = scmp.ne.s32.totalorder %s50, %s51
      %p65 = scmp.eq.s32.totalorder %s29, 1
      %p66 = por %p64, %p65
      %p68 = scmp.ne.s32.totalorder %s51, %s67
      %p69 = scmp.eq.s32.totalorder %s29, 0
      %p70 = por %p68, %p69
      %s72 = sadd.s32 %s71, 1
      %p75 = scmp.eq.s32.totalorder %s23, 1
      %p76 = scmp.ne.s32.totalorder %s71, %s73
      %p77 = scmp.eq.s32.totalorder %s23, 0
      %p78 = por %p76, %p77
      %p79 = scmp.ne.s32.totalorder %s71, %s73
      %p80 = scmp.eq.s32.totalorder %s28, 1
      %p81 = por %p79, %p80
      %p82 = scmp.ne.s32.totalorder %s73, %s74
      %p83 = scmp.eq.s32.totalorder %s28, 0
      %p84 = por %p82, %p83
      %p85 = scmp.ne.s32.totalorder %s73, %s74
      %p86 = scmp.eq.s32.totalorder %s29, 1
      %p87 = por %p85, %p86
      %p89 = scmp.ne.s32.totalorder %s74, %s88
      %p90 = scmp.eq.s32.totalorder %s29, 0
      %p91 = por %p89, %p90
      %s93 = sadd.s32 %s92, 1
      %p96 = scmp.eq.s32.totalorder %s23, 1
      %p97 = scmp.ne.s32.totalorder %s92, %s94
      %p98 = scmp.eq.s32.totalorder %s23, 0
      %p99 = por %p97, %p98
      %p100 = scmp.ne.s32.totalorder %s92, %s94
      %p101 = scmp.eq.s32.totalorder %s28, 1
      %p102 = por %p100, %p101
      %p103 = scmp.ne.s32.totalorder %s94, %s95
      %p104 = scmp.eq.s32.totalorder %s28, 0
      %p105 = por %p103, %p104
      %p106 = scmp.ne.s32.totalorder %s94, %s95
      %p107 = scmp.eq.s32.totalorder %s29, 1
      %p108 = por %p106, %p107
      %p110 = scmp.ne.s32.totalorder %s95, %s109
      %p111 = scmp.eq.s32.totalorder %s29, 0
      %p112 = por %p110, %p111
      %s114 = sadd.s32 %s113, 1
      %p117 = scmp.eq.s32.totalorder %s23, 1
      %p118 = scmp.ne.s32.totalorder %s113, %s115
      %p119 = scmp.eq.s32.totalorder %s23, 0
      %p120 = por %p118, %p119
      %p121 = scmp.ne.s32.totalorder %s113, %s115
      %p122 = scmp.eq.s32.totalorder %s28, 1
      %p123 = por %p121, %p122
      %p124 = scmp.ne.s32.totalorder %s115, %s116
      %p125 = scmp.eq.s32.totalorder %s28, 0
      %p126 = por %p124, %p125
      %p127 = scmp.ne.s32.totalorder %s115, %s116
      %p128 = scmp.eq.s32.totalorder %s29, 1
      %p129 = por %p127, %p128
      %p131 = scmp.ne.s32.totalorder %s116, %s130
      %p132 = scmp.eq.s32.totalorder %s29, 0
      %p133 = por %p131, %p132
      %s135 = sadd.s32 %s134, 1
      %p138 = scmp.eq.s32.totalorder %s23, 1
      %p139 = scmp.ne.s32.totalorder %s134, %s136
      %p140 = scmp.eq.s32.totalorder %s23, 0
      %p141 = por %p139, %p140
      %p142 = scmp.ne.s32.totalorder %s134, %s136
      %p143 = scmp.eq.s32.totalorder %s28, 1
      %p144 = por %p142, %p143
      %p145 = scmp.ne.s32.totalorder %s136, %s137
      %p146 = scmp.eq.s32.totalorder %s28, 0
      %p147 = por %p145, %p146
      %p148 = scmp.ne.s32.totalorder %s136, %s137
      %p149 = scmp.eq.s32.totalorder %s29, 1
      %p150 = por %p148, %p149
      %p152 = scmp.ne.s32.totalorder %s137, %s151
      %p153 = scmp.eq.s32.totalorder %s29, 0
      %p154 = por %p152, %p153
      %s156 = sadd.s32 %s155, 1
      %p159 = scmp.eq.s32.totalorder %s23, 1
      %p160 = scmp.ne.s32.totalorder %s155, %s157
      %p161 = scmp.eq.s32.totalorder %s23, 0
      %p162 = por %p160, %p161
      %p163 = scmp.ne.s32.totalorder %s155, %s157
      %p164 = scmp.eq.s32.totalorder %s28, 1
      %p165 = por %p163, %p164
      %p166 = scmp.ne.s32.totalorder %s157, %s158
      %p167 = scmp.eq.s32.totalorder %s28, 0
      %p168 = por %p166, %p167
      %p169 = scmp.ne.s32.totalorder %s157, %s158
      %p170 = scmp.eq.s32.totalorder %s29, 1
      %p171 = por %p169, %p170
      %p173 = scmp.ne.s32.totalorder %s158, %s172
      %p174 = scmp.eq.s32.totalorder %s29, 0
      %p175 = por %p173, %p174
      %s177 = sadd.s32 %s176, 1
      %p180 = scmp.eq.s32.totalorder %s23, 1
      %p181 = scmp.ne.s32.totalorder %s176, %s178
      %p182 = scmp.eq.s32.totalorder %s23, 0
      %p183 = por %p181, %p182
      %p184 = scmp.ne.s32.totalorder %s176, %s178
      %p185 = scmp.eq.s32.totalorder %s28, 1
      %p186 = por %p184, %p185
      %p187 = scmp.ne.s32.totalorder %s178, %s179
      %p188 = scmp.eq.s32.totalorder %s28, 0
      %p189 = por %p187, %p188
      %p190 = scmp.ne.s32.totalorder %s178, %s179
      %p191 = scmp.eq.s32.totalorder %s29, 1
      %p192 = por %p190, %p191
      %p194 = scmp.ne.s32.totalorder %s179, %s193
      %p195 = scmp.eq.s32.totalorder %s29, 0
      %p196 = por %p194, %p195
      %s198 = sadd.s32 %s197, 1
      %p201 = scmp.eq.s32.totalorder %s23, 1
      %p202 = scmp.ne.s32.totalorder %s197, %s199
      %p203 = scmp.eq.s32.totalorder %s23, 0
      %p204 = por %p202, %p203
      %p205 = scmp.ne.s32.totalorder %s197, %s199
      %p206 = scmp.eq.s32.totalorder %s28, 1
      %p207 = por %p205, %p206
      %p208 = scmp.ne.s32.totalorder %s199, %s200
      %p209 = scmp.eq.s32.totalorder %s28, 0
      %p210 = por %p208, %p209
      %p211 = scmp.ne.s32.totalorder %s199, %s200
      %p212 = scmp.eq.s32.totalorder %s29, 1
      %p213 = por %p211, %p212
      %p215 = scmp.ne.s32.totalorder %s200, %s214
      %p216 = scmp.eq.s32.totalorder %s29, 0
      %p217 = por %p215, %p216
      %s219 = sadd.s32 %s218, 1
      %p222 = scmp.eq.s32.totalorder %s23, 1
      %p223 = scmp.ne.s32.totalorder %s218, %s220
      %p224 = scmp.eq.s32.totalorder %s23, 0
      %p225 = por %p223, %p224
      %p226 = scmp.ne.s32.totalorder %s218, %s220
      %p227 = scmp.eq.s32.totalorder %s28, 1
      %p228 = por %p226, %p227
      %p229 = scmp.ne.s32.totalorder %s220, %s221
      %p230 = scmp.eq.s32.totalorder %s28, 0
      %p231 = por %p229, %p230
      %p232 = scmp.ne.s32.totalorder %s220, %s221
      %p233 = scmp.eq.s32.totalorder %s29, 1
      %p234 = por %p232, %p233
      %p236 = scmp.ne.s32.totalorder %s221, %s235
      %p237 = scmp.eq.s32.totalorder %s29, 0
      %p238 = por %p236, %p237
      %s240 = sadd.s32 %s239, 1
      %p243 = scmp.eq.s32.totalorder %s23, 1
      %p244 = scmp.ne.s32.totalorder %s239, %s241
      %p245 = scmp.eq.s32.totalorder %s23, 0
      %p246 = por %p244, %p245
      %p247 = scmp.ne.s32.totalorder %s239, %s241
      %p248 = scmp.eq.s32.totalorder %s28, 1
      %p249 = por %p247, %p248
      %p250 = scmp.ne.s32.totalorder %s241, %s242
      %p251 = scmp.eq.s32.totalorder %s28, 0
      %p252 = por %p250, %p251
      %p253 = scmp.ne.s32.totalorder %s241, %s242
      %p254 = scmp.eq.s32.totalorder %s29, 1
      %p255 = por %p253, %p254
      %p257 = scmp.ne.s32.totalorder %s242, %s256
      %p258 = scmp.eq.s32.totalorder %s29, 0
      %p259 = por %p257, %p258
      %s261 = sadd.s32 %s260, 1
      %p264 = scmp.eq.s32.totalorder %s23, 1
      %p265 = scmp.ne.s32.totalorder %s260, %s262
      %p266 = scmp.eq.s32.totalorder %s23, 0
      %p267 = por %p265, %p266
      %p268 = scmp.ne.s32.totalorder %s260, %s262
      %p269 = scmp.eq.s32.totalorder %s28, 1
      %p270 = por %p268, %p269
      %p271 = scmp.ne.s32.totalorder %s262, %s263
      %p272 = scmp.eq.s32.totalorder %s28, 0
      %p273 = por %p271, %p272
      %p274 = scmp.ne.s32.totalorder %s262, %s263
      %p275 = scmp.eq.s32.totalorder %s29, 1
      %p276 = por %p274, %p275
      %p278 = scmp.ne.s32.totalorder %s263, %s277
      %p279 = scmp.eq.s32.totalorder %s29, 0
      %p280 = por %p278, %p279
      %s281 = ssub.s32 %s30, %s42
      %s282 = ssub.s32 %s31, %s38
      %s283 = sor.u32 %s281, %s282
      %p284 = scmp.eq.s32.totalorder %s283, 0
      %s286 = sadd.s32 %s285, 1
      %s287 = scalar_select %p284, %s285, %s286
      %p290 = pneg %p284
      %p291 = scmp.eq.s32.totalorder %s23, 1
      %p292 = por %p290, %p291
      %p293 = scmp.ne.s32.totalorder %s285, %s288
      %p294 = scmp.eq.s32.totalorder %s23, 0
      %p295 = por %p293, %p294
      %p296 = scmp.ne.s32.totalorder %s285, %s288
      %p297 = scmp.eq.s32.totalorder %s28, 1
      %p298 = por %p296, %p297
      %p299 = scmp.ne.s32.totalorder %s288, %s289
      %p300 = scmp.eq.s32.totalorder %s28, 0
      %p301 = por %p299, %p300
      %p302 = scmp.ne.s32.totalorder %s288, %s289
      %p303 = scmp.eq.s32.totalorder %s29, 1
      %p304 = por %p302, %p303
      %p306 = scmp.ne.s32.totalorder %s289, %s305
      %p307 = scmp.eq.s32.totalorder %s29, 0
      %p308 = por %p306, %p307
      %p309 = scmp.le.s32.totalorder 1, %s23
      %p310 = scmp.lt.s32.totalorder %s23, 3
      %p311 = pnand %p309, %p310
      %p312 = pneg %p311
      // Predicated region
      $region9: #{tpu_custom_call.1} parent=5 // pred_check
        _
      $region10: #{tpu_custom_call.1} parent=5 // pred_check_branch
        %314 = sbr.rel (%p311) target = $region12
      $region11: #{tpu_custom_call.1} parent=5 // pred_region
        %s315 = ssub.s32 %s23, 1
        // Predicated region
        $region13: #{tpu_custom_call.1} parent=11 // pred_check
          %p316 = pneg %p84
        $region14: #{tpu_custom_call.1} parent=11 // pred_check_branch
          %318 = sbr.rel (%p316) target = $region16
        $region15: #{tpu_custom_call.1} parent=11 // pred_region
          _
        $region16: #{tpu_custom_call.1} parent=11 // pred_fallthru
          _
        // Predicated region
        $region17: #{tpu_custom_call.1} parent=11 // pred_check
          %p319 = pneg %p105
        $region18: #{tpu_custom_call.1} parent=11 // pred_check_branch
          %321 = sbr.rel (%p319) target = $region20
        $region19: #{tpu_custom_call.1} parent=11 // pred_region
          _
        $region20: #{tpu_custom_call.1} parent=11 // pred_fallthru
          _
        // Predicated region
        $region21: #{tpu_custom_call.1} parent=11 // pred_check
          %p322 = pneg %p126
        $region22: #{tpu_custom_call.1} parent=11 // pred_check_branch
          %324 = sbr.rel (%p322) target = $region24
        $region23: #{tpu_custom_call.1} parent=11 // pred_region
          _
        $region24: #{tpu_custom_call.1} parent=11 // pred_fallthru
          _
        // Predicated region
        $region25: #{tpu_custom_call.1} parent=11 // pred_check
          %p325 = pneg %p147
        $region26: #{tpu_custom_call.1} parent=11 // pred_check_branch
          %327 = sbr.rel (%p325) target = $region28
        $region27: #{tpu_custom_call.1} parent=11 // pred_region
          _
        $region28: #{tpu_custom_call.1} parent=11 // pred_fallthru
          _
        // Predicated region
        $region29: #{tpu_custom_call.1} parent=11 // pred_check
          %p328 = pneg %p168
        $region30: #{tpu_custom_call.1} parent=11 // pred_check_branch
          %330 = sbr.rel (%p328) target = $region32
        $region31: #{tpu_custom_call.1} parent=11 // pred_region
          _
        $region32: #{tpu_custom_call.1} parent=11 // pred_fallthru
          _
        // Predicated region
        $region33: #{tpu_custom_call.1} parent=11 // pred_check
          %p331 = pneg %p189
        $region34: #{tpu_custom_call.1} parent=11 // pred_check_branch
          %333 = sbr.rel (%p331) target = $region36
        $region35: #{tpu_custom_call.1} parent=11 // pred_region
          _
        $region36: #{tpu_custom_call.1} parent=11 // pred_fallthru
          _
        // Predicated region
        $region37: #{tpu_custom_call.1} parent=11 // pred_check
          %p334 = pneg %p210
        $region38: #{tpu_custom_call.1} parent=11 // pred_check_branch
          %336 = sbr.rel (%p334) target = $region40
        $region39: #{tpu_custom_call.1} parent=11 // pred_region
          _
        $region40: #{tpu_custom_call.1} parent=11 // pred_fallthru
          _
        // Predicated region
        $region41: #{tpu_custom_call.1} parent=11 // pred_check
          %p337 = pneg %p231
        $region42: #{tpu_custom_call.1} parent=11 // pred_check_branch
          %339 = sbr.rel (%p337) target = $region44
        $region43: #{tpu_custom_call.1} parent=11 // pred_region
          _
        $region44: #{tpu_custom_call.1} parent=11 // pred_fallthru
          _
        // Predicated region
        $region45: #{tpu_custom_call.1} parent=11 // pred_check
          %p340 = pneg %p252
        $region46: #{tpu_custom_call.1} parent=11 // pred_check_branch
          %342 = sbr.rel (%p340) target = $region48
        $region47: #{tpu_custom_call.1} parent=11 // pred_region
          _
        $region48: #{tpu_custom_call.1} parent=11 // pred_fallthru
          _
        // Predicated region
        $region49: #{tpu_custom_call.1} parent=11 // pred_check
          %p343 = pneg %p273
        $region50: #{tpu_custom_call.1} parent=11 // pred_check_branch
          %345 = sbr.rel (%p343) target = $region52
        $region51: #{tpu_custom_call.1} parent=11 // pred_region
          _
        $region52: #{tpu_custom_call.1} parent=11 // pred_fallthru
          _
      $region12: #{tpu_custom_call.1} parent=5 // pred_fallthru
        _
      %p346 = scmp.lt.s32.totalorder %s23, 2
      // Predicated region
      $region53: #{tpu_custom_call.1} parent=5 // pred_check
        %p347 = pneg %p346
      $region54: #{tpu_custom_call.1} parent=5 // pred_check_branch
        %349 = sbr.rel (%p347) target = $region56
      $region55: #{tpu_custom_call.1} parent=5 // pred_region
        // Predicated region
        $region57: #{tpu_custom_call.1} parent=55 // pred_check
          %p350 = pneg %p57
        $region58: #{tpu_custom_call.1} parent=55 // pred_check_branch
          %352 = sbr.rel (%p350) target = $region60
        $region59: #{tpu_custom_call.1} parent=55 // pred_region
          %s353 = sand.u32 %s47, 1
          %s354 = scalar_lea.sflag [#allocation3], %s353
          %s355 = sand.u32 %s47, 1
          %s356 = smul.addr %s355, 64
          %s357 = scalar_lea.vmem [#allocation2], %s356
          %s358 = smul.u32 2, %s31
          %360 = vsyncadd %s354, 0
          %s361 = smul.addr %s30, 8
          %s362 = sadd.s32 %s358, %s361
          %s363 = smul.addr %s362, 8
          %s364 = scalar_lea.hbm %s0, %s363
          %s365 = sshll.u32 %s364, 4
          %s366 = int_to_ptr.hbm [resolvable:$true] %s365
          %s367 = sshll.u32 %s357, 4
          %s368 = int_to_ptr.vmem [resolvable:$true] %s367
          %373 = dma.hbm_to_vmem [thread:$0]  %s366, 1024, %s368, %s354, 256, 256, 16
        $region60: #{tpu_custom_call.1} parent=55 // pred_fallthru
          _
      $region56: #{tpu_custom_call.1} parent=5 // pred_fallthru
        _
      %p374 = scmp.le.s32.totalorder 1, %s23
      %p375 = scmp.lt.s32.totalorder %s23, 3
      %p376 = pnand %p374, %p375
      %p377 = pneg %p376
      // Predicated region
      $region61: #{tpu_custom_call.1} parent=5 // pred_check
        _
      $region62: #{tpu_custom_call.1} parent=5 // pred_check_branch
        %379 = sbr.rel (%p376) target = $region64
      $region63: #{tpu_custom_call.1} parent=5 // pred_region
        %s380 = ssub.s32 %s23, 1
        %s381 = sand.u32 %s50, 1
        %s382 = scalar_lea.sflag [#allocation3], %s381
        %s383 = sand.u32 %s50, 1
        %s384 = smul.addr %s383, 64
        %s385 = scalar_lea.vmem [#allocation2], %s384
        // Predicated region
        $region65: #{tpu_custom_call.1} parent=63 // pred_check
          %p386 = pneg %p63
        $region66: #{tpu_custom_call.1} parent=63 // pred_check_branch
          %388 = sbr.rel (%p386) target = $region68
        $region67: #{tpu_custom_call.1} parent=63 // pred_region
          %390 = dma.done %s382, 1024
        $region68: #{tpu_custom_call.1} parent=63 // pred_fallthru
          _
        %s391 = sand.u32 %s50, 1
        %s392 = scalar_lea.sflag [#allocation3], %s391
        %s393 = sand.u32 %s50, 1
        %s394 = smul.addr %s393, 64
        %s395 = scalar_lea.vmem [#allocation2], %s394
        %p396 = pneg %p63
        %p397 = pneg %p60
        %p398 = pneg %p84
        %p399 = pneg %p81
        %p400 = pneg %p105
        %p401 = pneg %p102
        %p402 = pneg %p126
        %p403 = pneg %p123
        %p404 = pneg %p147
        %p405 = pneg %p144
        %p406 = pneg %p168
        %p407 = pneg %p165
        %p408 = pneg %p189
        %p409 = pneg %p186
        %p410 = pneg %p210
        %p411 = pneg %p207
        %p412 = pneg %p231
        %p413 = pneg %p228
        %p414 = pneg %p252
        %p415 = pneg %p249
        %p416 = pneg %p273
        %p417 = pneg %p270
        %p418 = pneg %p301
        %p419 = pneg %p298
        %s420 = sand.u32 %s288, 1
        %s421 = scalar_lea.sflag [#allocation4], %s420
        %s422 = sand.u32 %s288, 1
        %s423 = smul.addr %s422, 64
        %s424 = scalar_lea.vmem [#allocation5], %s423
        %s425 = smul.u32 2, %s33
        %s426 = smul.u32 2, %s33
        %v428 = vld [vmem:[%s385] sm:$0xff]
        %v429 = vld [vmem:[%s385 + $0x8] sm:$0xff]
        %v430 = vld [vmem:[%s385 + $0x10] sm:$0xff]
        %v431 = vld [vmem:[%s385 + $0x18] sm:$0xff]
        %v432 = vld [vmem:[%s385 + $0x20] sm:$0xff]
        %v433 = vld [vmem:[%s385 + $0x28] sm:$0xff]
        %v434 = vld [vmem:[%s385 + $0x30] sm:$0xff]
        %v435 = vld [vmem:[%s385 + $0x38] sm:$0xff]
        %v436 = vld [vmem:[%s1] sm:$0xf]
        %v437 = vld [vmem:[%s1 + $0x4] sm:$0xf]
        %v438 = vld [vmem:[%s1 + $0x8] sm:$0xf]
        %v439 = vld [vmem:[%s1 + $0xc] sm:$0xf]
        %v440 = vld [vmem:[%s3] sm:$0xf]
        %v441 = vld [vmem:[%s3 + $0x4] sm:$0xf]
        %v442 = vld [vmem:[%s5] sm:$0xf]
        %v443 = vld [vmem:[%s5 + $0x4] sm:$0xf]
        %v444 = vld [vmem:[%s5 + $0x8] sm:$0xf]
        %v445 = vld [vmem:[%s5 + $0xc] sm:$0xf]
        %v446 = vld [vmem:[%s7] sm:$0xf]
        %v447 = vld [vmem:[%s7 + $0x4] sm:$0xf]
        %v448 = vld [vmem:[%s7 + $0x8] sm:$0xf]
        %v449 = vld [vmem:[%s7 + $0xc] sm:$0xf]
        %v450 = vld [vmem:[%s9] sm:$0xf]
        %v451 = vld [vmem:[%s9 + $0x4] sm:$0xf]
        %v452 = vld [vmem:[%s9 + $0x8] sm:$0xf]
        %v453 = vld [vmem:[%s9 + $0xc] sm:$0xf]
        %v454 = vld [vmem:[%s9 + $0x10] sm:$0xf]
        %v455 = vld [vmem:[%s9 + $0x14] sm:$0xf]
        %v456 = vld [vmem:[%s9 + $0x18] sm:$0xf]
        %v457 = vld [vmem:[%s9 + $0x1c] sm:$0xf]
        %v458 = vld [vmem:[%s2] sm:$0xff]
        %v459 = vld [vmem:[%s2 + $0x8] sm:$0xff]
        %v460 = vld [vmem:[%s2 + $0x10] sm:$0xff]
        %v461 = vld [vmem:[%s2 + $0x18] sm:$0xff]
        %v462 = vld [vmem:[%s4] sm:$0xff]
        %v463 = vld [vmem:[%s4 + $0x8] sm:$0xff]
        %v464 = vld [vmem:[%s6] sm:$0xff]
        %v465 = vld [vmem:[%s6 + $0x8] sm:$0xff]
        %v466 = vld [vmem:[%s6 + $0x10] sm:$0xff]
        %v467 = vld [vmem:[%s6 + $0x18] sm:$0xff]
        %v468 = vld [vmem:[%s8] sm:$0xff]
        %v469 = vld [vmem:[%s8 + $0x8] sm:$0xff]
        %v470 = vld [vmem:[%s8 + $0x10] sm:$0xff]
        %v471 = vld [vmem:[%s8 + $0x18] sm:$0xff]
        %v472 = vld [vmem:[%s10] sm:$0xff]
        %v473 = vld [vmem:[%s10 + $0x8] sm:$0xff]
        %v474 = vld [vmem:[%s10 + $0x10] sm:$0xff]
        %v475 = vld [vmem:[%s10 + $0x18] sm:$0xff]
        %v476 = vld [vmem:[%s10 + $0x20] sm:$0xff]
        %v477 = vld [vmem:[%s10 + $0x28] sm:$0xff]
        %v478 = vld [vmem:[%s10 + $0x30] sm:$0xff]
        %v479 = vld [vmem:[%s10 + $0x38] sm:$0xff]
        %v480 = vpack.c.bf16 %v430, %v428
        %v481 = vpack.c.bf16 %v431, %v429
        %v482 = vpack.c.bf16 %v434, %v432
        %v483 = vpack.c.bf16 %v435, %v433
        %485 = vset.pattern.permute.xlu0 0
        %486 = vperm.xlu0 %485, %v458
        %v487 = vpop.permute.xlu0 %486
        %490 = vset.pattern.permute.xlu0 0
        %491 = vperm.xlu0 %490, %v459
        %v492 = vpop.permute.xlu0 %491
        %495 = vset.pattern.permute.xlu0 0
        %496 = vperm.xlu0 %495, %v460
        %v497 = vpop.permute.xlu0 %496
        %500 = vset.pattern.permute.xlu0 0
        %501 = vperm.xlu0 %500, %v461
        %v502 = vpop.permute.xlu0 %501
        %v508 = vunpack.c.l.b16 %v436
        %v509 = vunpack.c.l.b16 %v437
        %v510 = vunpack.c.l.b16 %v438
        %v511 = vunpack.c.l.b16 %v439
        %v512 = vpack.c.b16 %v509, %v508
        %v513 = vpack.c.b16 %v511, %v510
        %vm514 = vcmask 261120
        %v516 = vsel %vm514, %v512, 0
        %v519 = vsel %vm514, %v513, 0
        %521 = vmatpush.bf16.msra.mxu0 0
        %522 = vmatpush.bf16.msra.mxu0 0
        %523 = vmatpush.bf16.msra.mxu0 0
        %524 = vmatpush.bf16.msra.mxu0 0
        %525 = vmatpush.bf16.msra.mxu0 0
        %526 = vmatpush.bf16.msra.mxu0 0
        %527 = vmatpush.bf16.msra.mxu0 %v482
        %528 = vmatpush.bf16.msra.mxu0 %v480
        %529 = vmatmul.bf16.gmra.mxu0 %v516
        %v530 = vpop.f32.mrf.mxu0
        %v531 = vadd.f32 %v487, %v530
        %v532 = vpop.f32.mrf.mxu0
        %v533 = vadd.f32 %v492, %v532
        %534 = vmatmul.bf16.gmra.mxu0 %v519
        %v535 = vpop.f32.mrf.mxu0
        %v536 = vadd.f32 %v497, %v535
        %v537 = vpop.f32.mrf.mxu0
        %v538 = vadd.f32 %v502, %v537
        %539 = vdwg.mxu0
        %540 = vmatpush.bf16.msra.mxu0 0
        %541 = vmatpush.bf16.msra.mxu0 0
        %542 = vmatpush.bf16.msra.mxu0 0
        %543 = vmatpush.bf16.msra.mxu0 0
        %544 = vmatpush.bf16.msra.mxu0 0
        %545 = vmatpush.bf16.msra.mxu0 0
        %546 = vmatpush.bf16.msra.mxu0 %v483
        %547 = vmatpush.bf16.msra.mxu0 %v481
        %548 = vmatmul.bf16.gmra.mxu0 %v516
        %v549 = vpop.f32.mrf.mxu0
        %v550 = vadd.f32 %v487, %v549
        %v551 = vpop.f32.mrf.mxu0
        %v552 = vadd.f32 %v492, %v551
        %553 = vmatmul.bf16.gmra.mxu0 %v519
        %v554 = vpop.f32.mrf.mxu0
        %v555 = vadd.f32 %v497, %v554
        %v556 = vpop.f32.mrf.mxu0
        %v557 = vadd.f32 %v502, %v556
        %558 = vdwg.mxu0
        %v559 = vpack.c.bf16 %v550, %v531
        %v560 = vpack.c.bf16 %v552, %v533
        %v561 = vpack.c.bf16 %v555, %v536
        %v562 = vpack.c.bf16 %v557, %v538
        %v563 = vunpack.c.l.bf16 %v559
        %v564 = vunpack.c.h.bf16 %v559
        %v565 = vunpack.c.l.bf16 %v560
        %v566 = vunpack.c.h.bf16 %v560
        %v567 = vunpack.c.l.bf16 %v561
        %v568 = vunpack.c.h.bf16 %v561
        %v569 = vunpack.c.l.bf16 %v562
        %v570 = vunpack.c.h.bf16 %v562
        %v571 = vmax.f32 %v563, 0.0
        %v572 = vmax.f32 %v564, 0.0
        %v573 = vmax.f32 %v565, 0.0
        %v574 = vmax.f32 %v566, 0.0
        %v575 = vmax.f32 %v567, 0.0
        %v576 = vmax.f32 %v568, 0.0
        %v577 = vmax.f32 %v569, 0.0
        %v578 = vmax.f32 %v570, 0.0
        %v579 = vpack.c.bf16 %v573, %v571
        %v580 = vpack.c.bf16 %v574, %v572
        %v581 = vpack.c.bf16 %v577, %v575
        %v582 = vpack.c.bf16 %v578, %v576
        %584 = vset.pattern.permute.xlu0 0
        %585 = vperm.xlu0 %584, %v462
        %v586 = vpop.permute.xlu0 %585
        %589 = vset.pattern.permute.xlu0 0
        %590 = vperm.xlu0 %589, %v463
        %v591 = vpop.permute.xlu0 %590
        %v595 = vunpack.c.l.b16 %v440
        %v596 = vunpack.c.l.b16 %v441
        %v597 = vpack.c.b16 %v596, %v595
        %v599 = vsel %vm514, %v597, 0
        %601 = vmatpush.bf16.msra.mxu0 0
        %602 = vmatpush.bf16.msra.mxu0 0
        %603 = vmatpush.bf16.msra.mxu0 0
        %604 = vmatpush.bf16.msra.mxu0 0
        %605 = vmatpush.bf16.msra.mxu0 0
        %606 = vmatpush.bf16.msra.mxu0 0
        %607 = vmatpush.bf16.msra.mxu0 %v581
        %608 = vmatpush.bf16.msra.mxu0 %v579
        %609 = vmatmul.bf16.gmra.mxu0 %v599
        %v610 = vpop.f32.mrf.mxu0
        %v611 = vadd.f32 %v586, %v610
        %v612 = vpop.f32.mrf.mxu0
        %v613 = vadd.f32 %v591, %v612
        %614 = vdwg.mxu0
        %615 = vmatpush.bf16.msra.mxu0 0
        %616 = vmatpush.bf16.msra.mxu0 0
        %617 = vmatpush.bf16.msra.mxu0 0
        %618 = vmatpush.bf16.msra.mxu0 0
        %619 = vmatpush.bf16.msra.mxu0 0
        %620 = vmatpush.bf16.msra.mxu0 0
        %621 = vmatpush.bf16.msra.mxu0 %v582
        %622 = vmatpush.bf16.msra.mxu0 %v580
        %623 = vmatmul.bf16.gmra.mxu0 %v599
        %v624 = vpop.f32.mrf.mxu0
        %v625 = vadd.f32 %v586, %v624
        %v626 = vpop.f32.mrf.mxu0
        %v627 = vadd.f32 %v591, %v626
        %628 = vdwg.mxu0
        %v629 = vmax.f32 %v611, 0.0
        %v630 = vmax.f32 %v625, 0.0
        %v631 = vmax.f32 %v613, 0.0
        %v632 = vmax.f32 %v627, 0.0
        %v633 = vpack.c.bf16 %v631, %v629
        %v634 = vpack.c.bf16 %v632, %v630
        %636 = vset.pattern.permute.xlu0 0
        %637 = vperm.xlu0 %636, %v464
        %v638 = vpop.permute.xlu0 %637
        %641 = vset.pattern.permute.xlu0 0
        %642 = vperm.xlu0 %641, %v465
        %v643 = vpop.permute.xlu0 %642
        %646 = vset.pattern.permute.xlu0 0
        %647 = vperm.xlu0 %646, %v466
        %v648 = vpop.permute.xlu0 %647
        %651 = vset.pattern.permute.xlu0 0
        %652 = vperm.xlu0 %651, %v467
        %v653 = vpop.permute.xlu0 %652
        %v659 = vunpack.c.l.b16 %v442
        %v660 = vunpack.c.l.b16 %v443
        %v661 = vunpack.c.l.b16 %v444
        %v662 = vunpack.c.l.b16 %v445
        %v663 = vpack.c.b16 %v660, %v659
        %v664 = vpack.c.b16 %v662, %v661
        %vm665 = vcmask 130048
        %v667 = vsel %vm665, %v663, 0
        %v670 = vsel %vm665, %v664, 0
        %672 = vmatpush.bf16.msra.mxu0 0
        %673 = vmatpush.bf16.msra.mxu0 0
        %674 = vmatpush.bf16.msra.mxu0 0
        %675 = vmatpush.bf16.msra.mxu0 0
        %676 = vmatpush.bf16.msra.mxu0 0
        %677 = vmatpush.bf16.msra.mxu0 0
        %678 = vmatpush.bf16.msra.mxu0 0
        %679 = vmatpush.bf16.msra.mxu0 %v633
        %680 = vmatmul.bf16.gmra.mxu0 %v667
        %v681 = vpop.f32.mrf.mxu0
        %v682 = vadd.f32 %v638, %v681
        %v683 = vpop.f32.mrf.mxu0
        %v684 = vadd.f32 %v643, %v683
        %685 = vmatmul.bf16.gmra.mxu0 %v670
        %v686 = vpop.f32.mrf.mxu0
        %v687 = vadd.f32 %v648, %v686
        %v688 = vpop.f32.mrf.mxu0
        %v689 = vadd.f32 %v653, %v688
        %690 = vdwg.mxu0
        %691 = vmatpush.bf16.msra.mxu0 0
        %692 = vmatpush.bf16.msra.mxu0 0
        %693 = vmatpush.bf16.msra.mxu0 0
        %694 = vmatpush.bf16.msra.mxu0 0
        %695 = vmatpush.bf16.msra.mxu0 0
        %696 = vmatpush.bf16.msra.mxu0 0
        %697 = vmatpush.bf16.msra.mxu0 0
        %698 = vmatpush.bf16.msra.mxu0 %v634
        %699 = vmatmul.bf16.gmra.mxu0 %v667
        %v700 = vpop.f32.mrf.mxu0
        %v701 = vadd.f32 %v638, %v700
        %v702 = vpop.f32.mrf.mxu0
        %v703 = vadd.f32 %v643, %v702
        %704 = vmatmul.bf16.gmra.mxu0 %v670
        %v705 = vpop.f32.mrf.mxu0
        %v706 = vadd.f32 %v648, %v705
        %v707 = vpop.f32.mrf.mxu0
        %v708 = vadd.f32 %v653, %v707
        %709 = vdwg.mxu0
        %711 = vset.pattern.permute.xlu0 0
        %712 = vperm.xlu0 %711, %v468
        %v713 = vpop.permute.xlu0 %712
        %716 = vset.pattern.permute.xlu0 0
        %717 = vperm.xlu0 %716, %v469
        %v718 = vpop.permute.xlu0 %717
        %721 = vset.pattern.permute.xlu0 0
        %722 = vperm.xlu0 %721, %v470
        %v723 = vpop.permute.xlu0 %722
        %726 = vset.pattern.permute.xlu0 0
        %727 = vperm.xlu0 %726, %v471
        %v728 = vpop.permute.xlu0 %727
        %v734 = vunpack.c.l.b16 %v446
        %v735 = vunpack.c.l.b16 %v447
        %v736 = vunpack.c.l.b16 %v448
        %v737 = vunpack.c.l.b16 %v449
        %v738 = vpack.c.b16 %v735, %v734
        %v739 = vpack.c.b16 %v737, %v736
        %v744 = vunpack.c.l.b16 %v559
        %v745 = vunpack.c.h.b16 %v559
        %v746 = vunpack.c.l.b16 %v560
        %v747 = vunpack.c.h.b16 %v560
        %v748 = vunpack.c.l.b16 %v561
        %v749 = vunpack.c.h.b16 %v561
        %v750 = vunpack.c.l.b16 %v562
        %v751 = vunpack.c.h.b16 %v562
        %v752 = vpack.c.b16 %v746, %v744
        %v753 = vpack.c.b16 %v747, %v745
        %v754 = vpack.c.b16 %v750, %v748
        %v755 = vpack.c.b16 %v751, %v749
        %v761 = vsel %vm514, %v738, 0
        %v764 = vsel %vm514, %v739, 0
        %766 = vmatpush.bf16.msra.mxu0 0
        %767 = vmatpush.bf16.msra.mxu0 0
        %768 = vmatpush.bf16.msra.mxu0 0
        %769 = vmatpush.bf16.msra.mxu0 0
        %770 = vmatpush.bf16.msra.mxu0 0
        %771 = vmatpush.bf16.msra.mxu0 0
        %772 = vmatpush.bf16.msra.mxu0 %v754
        %773 = vmatpush.bf16.msra.mxu0 %v752
        %774 = vmatmul.bf16.gmra.mxu0 %v761
        %v775 = vpop.f32.mrf.mxu0
        %v776 = vadd.f32 %v713, %v775
        %v777 = vpop.f32.mrf.mxu0
        %v778 = vadd.f32 %v718, %v777
        %779 = vmatmul.bf16.gmra.mxu0 %v764
        %v780 = vpop.f32.mrf.mxu0
        %v781 = vadd.f32 %v723, %v780
        %v782 = vpop.f32.mrf.mxu0
        %v783 = vadd.f32 %v728, %v782
        %784 = vdwg.mxu0
        %785 = vmatpush.bf16.msra.mxu0 0
        %786 = vmatpush.bf16.msra.mxu0 0
        %787 = vmatpush.bf16.msra.mxu0 0
        %788 = vmatpush.bf16.msra.mxu0 0
        %789 = vmatpush.bf16.msra.mxu0 0
        %790 = vmatpush.bf16.msra.mxu0 0
        %791 = vmatpush.bf16.msra.mxu0 %v755
        %792 = vmatpush.bf16.msra.mxu0 %v753
        %793 = vmatmul.bf16.gmra.mxu0 %v761
        %v794 = vpop.f32.mrf.mxu0
        %v795 = vadd.f32 %v713, %v794
        %v796 = vpop.f32.mrf.mxu0
        %v797 = vadd.f32 %v718, %v796
        %798 = vmatmul.bf16.gmra.mxu0 %v764
        %v799 = vpop.f32.mrf.mxu0
        %v800 = vadd.f32 %v723, %v799
        %v801 = vpop.f32.mrf.mxu0
        %v802 = vadd.f32 %v728, %v801
        %803 = vdwg.mxu0
        %v804 = vxor.u32 %v776, 2147483648
        %v805 = vxor.u32 %v795, 2147483648
        %v806 = vxor.u32 %v778, 2147483648
        %v807 = vxor.u32 %v797, 2147483648
        %v808 = vxor.u32 %v781, 2147483648
        %v809 = vxor.u32 %v800, 2147483648
        %v810 = vxor.u32 %v783, 2147483648
        %v811 = vxor.u32 %v802, 2147483648
        %v812 = vmul.f32 %v804, 1.442695
        %v813 = vpow.pop %v812
        %v814 = vmul.f32 %v805, 1.442695
        %v815 = vpow.pop %v814
        %v816 = vmul.f32 %v806, 1.442695
        %v817 = vpow.pop %v816
        %v818 = vmul.f32 %v807, 1.442695
        %v819 = vpow.pop %v818
        %v820 = vmul.f32 %v808, 1.442695
        %v821 = vpow.pop %v820
        %v822 = vmul.f32 %v809, 1.442695
        %v823 = vpow.pop %v822
        %v824 = vmul.f32 %v810, 1.442695
        %v825 = vpow.pop %v824
        %v826 = vmul.f32 %v811, 1.442695
        %v827 = vpow.pop %v826
        %v828 = vadd.f32 %v813, 1.0
        %v829 = vadd.f32 %v815, 1.0
        %v830 = vadd.f32 %v817, 1.0
        %v831 = vadd.f32 %v819, 1.0
        %v832 = vadd.f32 %v821, 1.0
        %v833 = vadd.f32 %v823, 1.0
        %v834 = vadd.f32 %v825, 1.0
        %v835 = vadd.f32 %v827, 1.0
        %v836 = vrcp.pop %v828
        %v837 = vmul.f32 %v828, %v836
        %v838 = vsub.f32 1.0, %v837
        %v839 = vmul.f32 %v836, %v838
        %v840 = vadd.f32 %v836, %v839
        %vm841 = vweird.f32 %v828
        %vm842 = vweird.f32 %v836
        %vm843 = vmor %vm841, %vm842
        %v844 = vsel %vm843, %v836, %v840
        %v845 = vand.u32 2147483647, %v828
        %vm846 = vcmp.eq.f32.partialorder %v845, 8.507059e+37
        %v847 = vand.u32 %v828, 2147483648
        %v848 = vor.u32 1.1754944e-38, %v847
        %v849 = vsel %vm846, %v848, %v844
        %v850 = vmul.f32 1.0, %v849
        %v851 = vrcp.pop %v829
        %v852 = vmul.f32 %v829, %v851
        %v853 = vsub.f32 1.0, %v852
        %v854 = vmul.f32 %v851, %v853
        %v855 = vadd.f32 %v851, %v854
        %vm856 = vweird.f32 %v829
        %vm857 = vweird.f32 %v851
        %vm858 = vmor %vm856, %vm857
        %v859 = vsel %vm858, %v851, %v855
        %v860 = vand.u32 2147483647, %v829
        %vm861 = vcmp.eq.f32.partialorder %v860, 8.507059e+37
        %v862 = vand.u32 %v829, 2147483648
        %v863 = vor.u32 1.1754944e-38, %v862
        %v864 = vsel %vm861, %v863, %v859
        %v865 = vmul.f32 1.0, %v864
        %v866 = vrcp.pop %v830
        %v867 = vmul.f32 %v830, %v866
        %v868 = vsub.f32 1.0, %v867
        %v869 = vmul.f32 %v866, %v868
        %v870 = vadd.f32 %v866, %v869
        %vm871 = vweird.f32 %v830
        %vm872 = vweird.f32 %v866
        %vm873 = vmor %vm871, %vm872
        %v874 = vsel %vm873, %v866, %v870
        %v875 = vand.u32 2147483647, %v830
        %vm876 = vcmp.eq.f32.partialorder %v875, 8.507059e+37
        %v877 = vand.u32 %v830, 2147483648
        %v878 = vor.u32 1.1754944e-38, %v877
        %v879 = vsel %vm876, %v878, %v874
        %v880 = vmul.f32 1.0, %v879
        %v881 = vrcp.pop %v831
        %v882 = vmul.f32 %v831, %v881
        %v883 = vsub.f32 1.0, %v882
        %v884 = vmul.f32 %v881, %v883
        %v885 = vadd.f32 %v881, %v884
        %vm886 = vweird.f32 %v831
        %vm887 = vweird.f32 %v881
        %vm888 = vmor %vm886, %vm887
        %v889 = vsel %vm888, %v881, %v885
        %v890 = vand.u32 2147483647, %v831
        %vm891 = vcmp.eq.f32.partialorder %v890, 8.507059e+37
        %v892 = vand.u32 %v831, 2147483648
        %v893 = vor.u32 1.1754944e-38, %v892
        %v894 = vsel %vm891, %v893, %v889
        %v895 = vmul.f32 1.0, %v894
        %v896 = vrcp.pop %v832
        %v897 = vmul.f32 %v832, %v896
        %v898 = vsub.f32 1.0, %v897
        %v899 = vmul.f32 %v896, %v898
        %v900 = vadd.f32 %v896, %v899
        %vm901 = vweird.f32 %v832
        %vm902 = vweird.f32 %v896
        %vm903 = vmor %vm901, %vm902
        %v904 = vsel %vm903, %v896, %v900
        %v905 = vand.u32 2147483647, %v832
        %vm906 = vcmp.eq.f32.partialorder %v905, 8.507059e+37
        %v907 = vand.u32 %v832, 2147483648
        %v908 = vor.u32 1.1754944e-38, %v907
        %v909 = vsel %vm906, %v908, %v904
        %v910 = vmul.f32 1.0, %v909
        %v911 = vrcp.pop %v833
        %v912 = vmul.f32 %v833, %v911
        %v913 = vsub.f32 1.0, %v912
        %v914 = vmul.f32 %v911, %v913
        %v915 = vadd.f32 %v911, %v914
        %vm916 = vweird.f32 %v833
        %vm917 = vweird.f32 %v911
        %vm918 = vmor %vm916, %vm917
        %v919 = vsel %vm918, %v911, %v915
        %v920 = vand.u32 2147483647, %v833
        %vm921 = vcmp.eq.f32.partialorder %v920, 8.507059e+37
        %v922 = vand.u32 %v833, 2147483648
        %v923 = vor.u32 1.1754944e-38, %v922
        %v924 = vsel %vm921, %v923, %v919
        %v925 = vmul.f32 1.0, %v924
        %v926 = vrcp.pop %v834
        %v927 = vmul.f32 %v834, %v926
        %v928 = vsub.f32 1.0, %v927
        %v929 = vmul.f32 %v926, %v928
        %v930 = vadd.f32 %v926, %v929
        %vm931 = vweird.f32 %v834
        %vm932 = vweird.f32 %v926
        %vm933 = vmor %vm931, %vm932
        %v934 = vsel %vm933, %v926, %v930
        %v935 = vand.u32 2147483647, %v834
        %vm936 = vcmp.eq.f32.partialorder %v935, 8.507059e+37
        %v937 = vand.u32 %v834, 2147483648
        %v938 = vor.u32 1.1754944e-38, %v937
        %v939 = vsel %vm936, %v938, %v934
        %v940 = vmul.f32 1.0, %v939
        %v941 = vrcp.pop %v835
        %v942 = vmul.f32 %v835, %v941
        %v943 = vsub.f32 1.0, %v942
        %v944 = vmul.f32 %v941, %v943
        %v945 = vadd.f32 %v941, %v944
        %vm946 = vweird.f32 %v835
        %vm947 = vweird.f32 %v941
        %vm948 = vmor %vm946, %vm947
        %v949 = vsel %vm948, %v941, %v945
        %v950 = vand.u32 2147483647, %v835
        %vm951 = vcmp.eq.f32.partialorder %v950, 8.507059e+37
        %v952 = vand.u32 %v835, 2147483648
        %v953 = vor.u32 1.1754944e-38, %v952
        %v954 = vsel %vm951, %v953, %v949
        %v955 = vmul.f32 1.0, %v954
        %v956 = vsub.f32 %v682, %v531
        %v957 = vsub.f32 %v701, %v550
        %v958 = vsub.f32 %v684, %v533
        %v959 = vsub.f32 %v703, %v552
        %v960 = vsub.f32 %v687, %v536
        %v961 = vsub.f32 %v706, %v555
        %v962 = vsub.f32 %v689, %v538
        %v963 = vsub.f32 %v708, %v557
        %v964 = vmul.f32 %v850, %v956
        %v965 = vmul.f32 %v865, %v957
        %v966 = vmul.f32 %v880, %v958
        %v967 = vmul.f32 %v895, %v959
        %v968 = vmul.f32 %v910, %v960
        %v969 = vmul.f32 %v925, %v961
        %v970 = vmul.f32 %v940, %v962
        %v971 = vmul.f32 %v955, %v963
        %v972 = vadd.f32 %v531, %v964
        %v973 = vadd.f32 %v550, %v965
        %v974 = vadd.f32 %v533, %v966
        %v975 = vadd.f32 %v552, %v967
        %v976 = vadd.f32 %v536, %v968
        %v977 = vadd.f32 %v555, %v969
        %v978 = vadd.f32 %v538, %v970
        %v979 = vadd.f32 %v557, %v971
        %v980 = vpack.c.bf16 %v973, %v972
        %v981 = vpack.c.bf16 %v975, %v974
        %v982 = vpack.c.bf16 %v977, %v976
        %v983 = vpack.c.bf16 %v979, %v978
        %v984 = vunpack.c.l.bf16 %v980
        %v985 = vunpack.c.h.bf16 %v980
        %v986 = vunpack.c.l.bf16 %v981
        %v987 = vunpack.c.h.bf16 %v981
        %v988 = vunpack.c.l.bf16 %v982
        %v989 = vunpack.c.h.bf16 %v982
        %v990 = vunpack.c.l.bf16 %v983
        %v991 = vunpack.c.h.bf16 %v983
        %v992 = vmax.f32 %v984, 0.0
        %v993 = vmax.f32 %v985, 0.0
        %v994 = vmax.f32 %v986, 0.0
        %v995 = vmax.f32 %v987, 0.0
        %v996 = vmax.f32 %v988, 0.0
        %v997 = vmax.f32 %v989, 0.0
        %v998 = vmax.f32 %v990, 0.0
        %v999 = vmax.f32 %v991, 0.0
        %v1000 = vpack.c.bf16 %v994, %v992
        %v1001 = vpack.c.bf16 %v995, %v993
        %v1002 = vpack.c.bf16 %v998, %v996
        %v1003 = vpack.c.bf16 %v999, %v997
        %1004 = vmatpush.bf16.msra.mxu0 0
        %1005 = vmatpush.bf16.msra.mxu0 0
        %1006 = vmatpush.bf16.msra.mxu0 0
        %1007 = vmatpush.bf16.msra.mxu0 0
        %1008 = vmatpush.bf16.msra.mxu0 0
        %1009 = vmatpush.bf16.msra.mxu0 0
        %1010 = vmatpush.bf16.msra.mxu0 %v1002
        %1011 = vmatpush.bf16.msra.mxu0 %v1000
        %1012 = vmatmul.bf16.gmra.mxu0 %v599
        %v1013 = vpop.f32.mrf.mxu0
        %v1014 = vadd.f32 %v586, %v1013
        %v1015 = vpop.f32.mrf.mxu0
        %v1016 = vadd.f32 %v591, %v1015
        %1017 = vdwg.mxu0
        %1018 = vmatpush.bf16.msra.mxu0 0
        %1019 = vmatpush.bf16.msra.mxu0 0
        %1020 = vmatpush.bf16.msra.mxu0 0
        %1021 = vmatpush.bf16.msra.mxu0 0
        %1022 = vmatpush.bf16.msra.mxu0 0
        %1023 = vmatpush.bf16.msra.mxu0 0
        %1024 = vmatpush.bf16.msra.mxu0 %v1003
        %1025 = vmatpush.bf16.msra.mxu0 %v1001
        %1026 = vmatmul.bf16.gmra.mxu0 %v599
        %v1027 = vpop.f32.mrf.mxu0
        %v1028 = vadd.f32 %v586, %v1027
        %v1029 = vpop.f32.mrf.mxu0
        %v1030 = vadd.f32 %v591, %v1029
        %1031 = vdwg.mxu0
        %v1032 = vmax.f32 %v1014, 0.0
        %v1033 = vmax.f32 %v1028, 0.0
        %v1034 = vmax.f32 %v1016, 0.0
        %v1035 = vmax.f32 %v1030, 0.0
        %v1036 = vpack.c.bf16 %v1034, %v1032
        %v1037 = vpack.c.bf16 %v1035, %v1033
        %1038 = vmatpush.bf16.msra.mxu0 0
        %1039 = vmatpush.bf16.msra.mxu0 0
        %1040 = vmatpush.bf16.msra.mxu0 0
        %1041 = vmatpush.bf16.msra.mxu0 0
        %1042 = vmatpush.bf16.msra.mxu0 0
        %1043 = vmatpush.bf16.msra.mxu0 0
        %1044 = vmatpush.bf16.msra.mxu0 0
        %1045 = vmatpush.bf16.msra.mxu0 %v1036
        %1046 = vmatmul.bf16.gmra.mxu0 %v667
        %v1047 = vpop.f32.mrf.mxu0
        %v1048 = vadd.f32 %v638, %v1047
        %v1049 = vpop.f32.mrf.mxu0
        %v1050 = vadd.f32 %v643, %v1049
        %1051 = vmatmul.bf16.gmra.mxu0 %v670
        %v1052 = vpop.f32.mrf.mxu0
        %v1053 = vadd.f32 %v648, %v1052
        %v1054 = vpop.f32.mrf.mxu0
        %v1055 = vadd.f32 %v653, %v1054
        %1056 = vdwg.mxu0
        %1057 = vmatpush.bf16.msra.mxu0 0
        %1058 = vmatpush.bf16.msra.mxu0 0
        %1059 = vmatpush.bf16.msra.mxu0 0
        %1060 = vmatpush.bf16.msra.mxu0 0
        %1061 = vmatpush.bf16.msra.mxu0 0
        %1062 = vmatpush.bf16.msra.mxu0 0
        %1063 = vmatpush.bf16.msra.mxu0 0
        %1064 = vmatpush.bf16.msra.mxu0 %v1037
        %1065 = vmatmul.bf16.gmra.mxu0 %v667
        %v1066 = vpop.f32.mrf.mxu0
        %v1067 = vadd.f32 %v638, %v1066
        %v1068 = vpop.f32.mrf.mxu0
        %v1069 = vadd.f32 %v643, %v1068
        %1070 = vmatmul.bf16.gmra.mxu0 %v670
        %v1071 = vpop.f32.mrf.mxu0
        %v1072 = vadd.f32 %v648, %v1071
        %v1073 = vpop.f32.mrf.mxu0
        %v1074 = vadd.f32 %v653, %v1073
        %1075 = vdwg.mxu0
        %v1080 = vunpack.c.l.b16 %v980
        %v1081 = vunpack.c.h.b16 %v980
        %v1082 = vunpack.c.l.b16 %v981
        %v1083 = vunpack.c.h.b16 %v981
        %v1084 = vunpack.c.l.b16 %v982
        %v1085 = vunpack.c.h.b16 %v982
        %v1086 = vunpack.c.l.b16 %v983
        %v1087 = vunpack.c.h.b16 %v983
        %v1088 = vpack.c.b16 %v1082, %v1080
        %v1089 = vpack.c.b16 %v1083, %v1081
        %v1090 = vpack.c.b16 %v1086, %v1084
        %v1091 = vpack.c.b16 %v1087, %v1085
        %1096 = vmatpush.bf16.msra.mxu0 0
        %1097 = vmatpush.bf16.msra.mxu0 0
        %1098 = vmatpush.bf16.msra.mxu0 0
        %1099 = vmatpush.bf16.msra.mxu0 0
        %1100 = vmatpush.bf16.msra.mxu0 0
        %1101 = vmatpush.bf16.msra.mxu0 0
        %1102 = vmatpush.bf16.msra.mxu0 %v1090
        %1103 = vmatpush.bf16.msra.mxu0 %v1088
        %1104 = vmatmul.bf16.gmra.mxu0 %v761
        %v1105 = vpop.f32.mrf.mxu0
        %v1106 = vadd.f32 %v713, %v1105
        %v1107 = vpop.f32.mrf.mxu0
        %v1108 = vadd.f32 %v718, %v1107
        %1109 = vmatmul.bf16.gmra.mxu0 %v764
        %v1110 = vpop.f32.mrf.mxu0
        %v1111 = vadd.f32 %v723, %v1110
        %v1112 = vpop.f32.mrf.mxu0
        %v1113 = vadd.f32 %v728, %v1112
        %1114 = vdwg.mxu0
        %1115 = vmatpush.bf16.msra.mxu0 0
        %1116 = vmatpush.bf16.msra.mxu0 0
        %1117 = vmatpush.bf16.msra.mxu0 0
        %1118 = vmatpush.bf16.msra.mxu0 0
        %1119 = vmatpush.bf16.msra.mxu0 0
        %1120 = vmatpush.bf16.msra.mxu0 0
        %1121 = vmatpush.bf16.msra.mxu0 %v1091
        %1122 = vmatpush.bf16.msra.mxu0 %v1089
        %1123 = vmatmul.bf16.gmra.mxu0 %v761
        %v1124 = vpop.f32.mrf.mxu0
        %v1125 = vadd.f32 %v713, %v1124
        %v1126 = vpop.f32.mrf.mxu0
        %v1127 = vadd.f32 %v718, %v1126
        %1128 = vmatmul.bf16.gmra.mxu0 %v764
        %v1129 = vpop.f32.mrf.mxu0
        %v1130 = vadd.f32 %v723, %v1129
        %v1131 = vpop.f32.mrf.mxu0
        %v1132 = vadd.f32 %v728, %v1131
        %1133 = vdwg.mxu0
        %v1134 = vxor.u32 %v1106, 2147483648
        %v1135 = vxor.u32 %v1125, 2147483648
        %v1136 = vxor.u32 %v1108, 2147483648
        %v1137 = vxor.u32 %v1127, 2147483648
        %v1138 = vxor.u32 %v1111, 2147483648
        %v1139 = vxor.u32 %v1130, 2147483648
        %v1140 = vxor.u32 %v1113, 2147483648
        %v1141 = vxor.u32 %v1132, 2147483648
        %v1142 = vmul.f32 %v1134, 1.442695
        %v1143 = vpow.pop %v1142
        %v1144 = vmul.f32 %v1135, 1.442695
        %v1145 = vpow.pop %v1144
        %v1146 = vmul.f32 %v1136, 1.442695
        %v1147 = vpow.pop %v1146
        %v1148 = vmul.f32 %v1137, 1.442695
        %v1149 = vpow.pop %v1148
        %v1150 = vmul.f32 %v1138, 1.442695
        %v1151 = vpow.pop %v1150
        %v1152 = vmul.f32 %v1139, 1.442695
        %v1153 = vpow.pop %v1152
        %v1154 = vmul.f32 %v1140, 1.442695
        %v1155 = vpow.pop %v1154
        %v1156 = vmul.f32 %v1141, 1.442695
        %v1157 = vpow.pop %v1156
        %v1158 = vadd.f32 %v1143, 1.0
        %v1159 = vadd.f32 %v1145, 1.0
        %v1160 = vadd.f32 %v1147, 1.0
        %v1161 = vadd.f32 %v1149, 1.0
        %v1162 = vadd.f32 %v1151, 1.0
        %v1163 = vadd.f32 %v1153, 1.0
        %v1164 = vadd.f32 %v1155, 1.0
        %v1165 = vadd.f32 %v1157, 1.0
        %v1166 = vrcp.pop %v1158
        %v1167 = vmul.f32 %v1158, %v1166
        %v1168 = vsub.f32 1.0, %v1167
        %v1169 = vmul.f32 %v1166, %v1168
        %v1170 = vadd.f32 %v1166, %v1169
        %vm1171 = vweird.f32 %v1158
        %vm1172 = vweird.f32 %v1166
        %vm1173 = vmor %vm1171, %vm1172
        %v1174 = vsel %vm1173, %v1166, %v1170
        %v1175 = vand.u32 2147483647, %v1158
        %vm1176 = vcmp.eq.f32.partialorder %v1175, 8.507059e+37
        %v1177 = vand.u32 %v1158, 2147483648
        %v1178 = vor.u32 1.1754944e-38, %v1177
        %v1179 = vsel %vm1176, %v1178, %v1174
        %v1180 = vmul.f32 1.0, %v1179
        %v1181 = vrcp.pop %v1159
        %v1182 = vmul.f32 %v1159, %v1181
        %v1183 = vsub.f32 1.0, %v1182
        %v1184 = vmul.f32 %v1181, %v1183
        %v1185 = vadd.f32 %v1181, %v1184
        %vm1186 = vweird.f32 %v1159
        %vm1187 = vweird.f32 %v1181
        %vm1188 = vmor %vm1186, %vm1187
        %v1189 = vsel %vm1188, %v1181, %v1185
        %v1190 = vand.u32 2147483647, %v1159
        %vm1191 = vcmp.eq.f32.partialorder %v1190, 8.507059e+37
        %v1192 = vand.u32 %v1159, 2147483648
        %v1193 = vor.u32 1.1754944e-38, %v1192
        %v1194 = vsel %vm1191, %v1193, %v1189
        %v1195 = vmul.f32 1.0, %v1194
        %v1196 = vrcp.pop %v1160
        %v1197 = vmul.f32 %v1160, %v1196
        %v1198 = vsub.f32 1.0, %v1197
        %v1199 = vmul.f32 %v1196, %v1198
        %v1200 = vadd.f32 %v1196, %v1199
        %vm1201 = vweird.f32 %v1160
        %vm1202 = vweird.f32 %v1196
        %vm1203 = vmor %vm1201, %vm1202
        %v1204 = vsel %vm1203, %v1196, %v1200
        %v1205 = vand.u32 2147483647, %v1160
        %vm1206 = vcmp.eq.f32.partialorder %v1205, 8.507059e+37
        %v1207 = vand.u32 %v1160, 2147483648
        %v1208 = vor.u32 1.1754944e-38, %v1207
        %v1209 = vsel %vm1206, %v1208, %v1204
        %v1210 = vmul.f32 1.0, %v1209
        %v1211 = vrcp.pop %v1161
        %v1212 = vmul.f32 %v1161, %v1211
        %v1213 = vsub.f32 1.0, %v1212
        %v1214 = vmul.f32 %v1211, %v1213
        %v1215 = vadd.f32 %v1211, %v1214
        %vm1216 = vweird.f32 %v1161
        %vm1217 = vweird.f32 %v1211
        %vm1218 = vmor %vm1216, %vm1217
        %v1219 = vsel %vm1218, %v1211, %v1215
        %v1220 = vand.u32 2147483647, %v1161
        %vm1221 = vcmp.eq.f32.partialorder %v1220, 8.507059e+37
        %v1222 = vand.u32 %v1161, 2147483648
        %v1223 = vor.u32 1.1754944e-38, %v1222
        %v1224 = vsel %vm1221, %v1223, %v1219
        %v1225 = vmul.f32 1.0, %v1224
        %v1226 = vrcp.pop %v1162
        %v1227 = vmul.f32 %v1162, %v1226
        %v1228 = vsub.f32 1.0, %v1227
        %v1229 = vmul.f32 %v1226, %v1228
        %v1230 = vadd.f32 %v1226, %v1229
        %vm1231 = vweird.f32 %v1162
        %vm1232 = vweird.f32 %v1226
        %vm1233 = vmor %vm1231, %vm1232
        %v1234 = vsel %vm1233, %v1226, %v1230
        %v1235 = vand.u32 2147483647, %v1162
        %vm1236 = vcmp.eq.f32.partialorder %v1235, 8.507059e+37
        %v1237 = vand.u32 %v1162, 2147483648
        %v1238 = vor.u32 1.1754944e-38, %v1237
        %v1239 = vsel %vm1236, %v1238, %v1234
        %v1240 = vmul.f32 1.0, %v1239
        %v1241 = vrcp.pop %v1163
        %v1242 = vmul.f32 %v1163, %v1241
        %v1243 = vsub.f32 1.0, %v1242
        %v1244 = vmul.f32 %v1241, %v1243
        %v1245 = vadd.f32 %v1241, %v1244
        %vm1246 = vweird.f32 %v1163
        %vm1247 = vweird.f32 %v1241
        %vm1248 = vmor %vm1246, %vm1247
        %v1249 = vsel %vm1248, %v1241, %v1245
        %v1250 = vand.u32 2147483647, %v1163
        %vm1251 = vcmp.eq.f32.partialorder %v1250, 8.507059e+37
        %v1252 = vand.u32 %v1163, 2147483648
        %v1253 = vor.u32 1.1754944e-38, %v1252
        %v1254 = vsel %vm1251, %v1253, %v1249
        %v1255 = vmul.f32 1.0, %v1254
        %v1256 = vrcp.pop %v1164
        %v1257 = vmul.f32 %v1164, %v1256
        %v1258 = vsub.f32 1.0, %v1257
        %v1259 = vmul.f32 %v1256, %v1258
        %v1260 = vadd.f32 %v1256, %v1259
        %vm1261 = vweird.f32 %v1164
        %vm1262 = vweird.f32 %v1256
        %vm1263 = vmor %vm1261, %vm1262
        %v1264 = vsel %vm1263, %v1256, %v1260
        %v1265 = vand.u32 2147483647, %v1164
        %vm1266 = vcmp.eq.f32.partialorder %v1265, 8.507059e+37
        %v1267 = vand.u32 %v1164, 2147483648
        %v1268 = vor.u32 1.1754944e-38, %v1267
        %v1269 = vsel %vm1266, %v1268, %v1264
        %v1270 = vmul.f32 1.0, %v1269
        %v1271 = vrcp.pop %v1165
        %v1272 = vmul.f32 %v1165, %v1271
        %v1273 = vsub.f32 1.0, %v1272
        %v1274 = vmul.f32 %v1271, %v1273
        %v1275 = vadd.f32 %v1271, %v1274
        %vm1276 = vweird.f32 %v1165
        %vm1277 = vweird.f32 %v1271
        %vm1278 = vmor %vm1276, %vm1277
        %v1279 = vsel %vm1278, %v1271, %v1275
        %v1280 = vand.u32 2147483647, %v1165
        %vm1281 = vcmp.eq.f32.partialorder %v1280, 8.507059e+37
        %v1282 = vand.u32 %v1165, 2147483648
        %v1283 = vor.u32 1.1754944e-38, %v1282
        %v1284 = vsel %vm1281, %v1283, %v1279
        %v1285 = vmul.f32 1.0, %v1284
        %v1286 = vsub.f32 %v1048, %v972
        %v1287 = vsub.f32 %v1067, %v973
        %v1288 = vsub.f32 %v1050, %v974
        %v1289 = vsub.f32 %v1069, %v975
        %v1290 = vsub.f32 %v1053, %v976
        %v1291 = vsub.f32 %v1072, %v977
        %v1292 = vsub.f32 %v1055, %v978
        %v1293 = vsub.f32 %v1074, %v979
        %v1294 = vmul.f32 %v1180, %v1286
        %v1295 = vmul.f32 %v1195, %v1287
        %v1296 = vmul.f32 %v1210, %v1288
        %v1297 = vmul.f32 %v1225, %v1289
        %v1298 = vmul.f32 %v1240, %v1290
        %v1299 = vmul.f32 %v1255, %v1291
        %v1300 = vmul.f32 %v1270, %v1292
        %v1301 = vmul.f32 %v1285, %v1293
        %v1302 = vadd.f32 %v972, %v1294
        %v1303 = vadd.f32 %v973, %v1295
        %v1304 = vadd.f32 %v974, %v1296
        %v1305 = vadd.f32 %v975, %v1297
        %v1306 = vadd.f32 %v976, %v1298
        %v1307 = vadd.f32 %v977, %v1299
        %v1308 = vadd.f32 %v978, %v1300
        %v1309 = vadd.f32 %v979, %v1301
        %v1310 = vpack.c.bf16 %v1304, %v1302
        %v1311 = vpack.c.bf16 %v1305, %v1303
        %v1312 = vpack.c.bf16 %v1308, %v1306
        %v1313 = vpack.c.bf16 %v1309, %v1307
        %1315 = vset.pattern.permute.xlu0 0
        %1316 = vperm.xlu0 %1315, %v472
        %v1317 = vpop.permute.xlu0 %1316
        %1320 = vset.pattern.permute.xlu0 0
        %1321 = vperm.xlu0 %1320, %v473
        %v1322 = vpop.permute.xlu0 %1321
        %1325 = vset.pattern.permute.xlu0 0
        %1326 = vperm.xlu0 %1325, %v474
        %v1327 = vpop.permute.xlu0 %1326
        %1330 = vset.pattern.permute.xlu0 0
        %1331 = vperm.xlu0 %1330, %v475
        %v1332 = vpop.permute.xlu0 %1331
        %1335 = vset.pattern.permute.xlu0 0
        %1336 = vperm.xlu0 %1335, %v476
        %v1337 = vpop.permute.xlu0 %1336
        %1340 = vset.pattern.permute.xlu0 0
        %1341 = vperm.xlu0 %1340, %v477
        %v1342 = vpop.permute.xlu0 %1341
        %1345 = vset.pattern.permute.xlu0 0
        %1346 = vperm.xlu0 %1345, %v478
        %v1347 = vpop.permute.xlu0 %1346
        %1350 = vset.pattern.permute.xlu0 0
        %1351 = vperm.xlu0 %1350, %v479
        %v1352 = vpop.permute.xlu0 %1351
        %v1362 = vunpack.c.l.b16 %v450
        %v1363 = vunpack.c.l.b16 %v451
        %v1364 = vunpack.c.l.b16 %v452
        %v1365 = vunpack.c.l.b16 %v453
        %v1366 = vunpack.c.l.b16 %v454
        %v1367 = vunpack.c.l.b16 %v455
        %v1368 = vunpack.c.l.b16 %v456
        %v1369 = vunpack.c.l.b16 %v457
        %v1370 = vpack.c.b16 %v1363, %v1362
        %v1371 = vpack.c.b16 %v1365, %v1364
        %v1372 = vpack.c.b16 %v1367, %v1366
        %v1373 = vpack.c.b16 %v1369, %v1368
        %v1375 = vsel %vm514, %v1370, 0
        %v1378 = vsel %vm514, %v1371, 0
        %v1381 = vsel %vm514, %v1372, 0
        %v1384 = vsel %vm514, %v1373, 0
        %1386 = vmatpush.bf16.msra.mxu0 0
        %1387 = vmatpush.bf16.msra.mxu0 0
        %1388 = vmatpush.bf16.msra.mxu0 0
        %1389 = vmatpush.bf16.msra.mxu0 0
        %1390 = vmatpush.bf16.msra.mxu0 0
        %1391 = vmatpush.bf16.msra.mxu0 0
        %1392 = vmatpush.bf16.msra.mxu0 %v1312
        %1393 = vmatpush.bf16.msra.mxu0 %v1310
        %1394 = vmatmul.bf16.gmra.mxu0 %v1375
        %v1395 = vpop.f32.mrf.mxu0
        %v1396 = vadd.f32 %v1317, %v1395
        %v1397 = vpop.f32.mrf.mxu0
        %v1398 = vadd.f32 %v1322, %v1397
        %1399 = vmatmul.bf16.gmra.mxu0 %v1378
        %v1400 = vpop.f32.mrf.mxu0
        %v1401 = vadd.f32 %v1327, %v1400
        %v1402 = vpop.f32.mrf.mxu0
        %v1403 = vadd.f32 %v1332, %v1402
        %1404 = vmatmul.bf16.gmra.mxu0 %v1381
        %v1405 = vpop.f32.mrf.mxu0
        %v1406 = vadd.f32 %v1337, %v1405
        %v1407 = vpop.f32.mrf.mxu0
        %v1408 = vadd.f32 %v1342, %v1407
        %1409 = vmatmul.bf16.gmra.mxu0 %v1384
        %v1410 = vpop.f32.mrf.mxu0
        %v1411 = vadd.f32 %v1347, %v1410
        %v1412 = vpop.f32.mrf.mxu0
        %v1413 = vadd.f32 %v1352, %v1412
        %1414 = vdwg.mxu0
        %1415 = vmatpush.bf16.msra.mxu0 0
        %1416 = vmatpush.bf16.msra.mxu0 0
        %1417 = vmatpush.bf16.msra.mxu0 0
        %1418 = vmatpush.bf16.msra.mxu0 0
        %1419 = vmatpush.bf16.msra.mxu0 0
        %1420 = vmatpush.bf16.msra.mxu0 0
        %1421 = vmatpush.bf16.msra.mxu0 %v1313
        %1422 = vmatpush.bf16.msra.mxu0 %v1311
        %1423 = vmatmul.bf16.gmra.mxu0 %v1375
        %v1424 = vpop.f32.mrf.mxu0
        %v1425 = vadd.f32 %v1317, %v1424
        %v1426 = vpop.f32.mrf.mxu0
        %v1427 = vadd.f32 %v1322, %v1426
        %1428 = vmatmul.bf16.gmra.mxu0 %v1378
        %v1429 = vpop.f32.mrf.mxu0
        %v1430 = vadd.f32 %v1327, %v1429
        %v1431 = vpop.f32.mrf.mxu0
        %v1432 = vadd.f32 %v1332, %v1431
        %1433 = vmatmul.bf16.gmra.mxu0 %v1381
        %v1434 = vpop.f32.mrf.mxu0
        %v1435 = vadd.f32 %v1337, %v1434
        %v1436 = vpop.f32.mrf.mxu0
        %v1437 = vadd.f32 %v1342, %v1436
        %1438 = vmatmul.bf16.gmra.mxu0 %v1384
        %v1439 = vpop.f32.mrf.mxu0
        %v1440 = vadd.f32 %v1347, %v1439
        %v1441 = vpop.f32.mrf.mxu0
        %v1442 = vadd.f32 %v1352, %v1441
        %1443 = vdwg.mxu0
        %v1444 = vxor.u32 %v1406, 2147483648
        %v1445 = vxor.u32 %v1435, 2147483648
        %v1446 = vxor.u32 %v1408, 2147483648
        %v1447 = vxor.u32 %v1437, 2147483648
        %v1448 = vxor.u32 %v1411, 2147483648
        %v1449 = vxor.u32 %v1440, 2147483648
        %v1450 = vxor.u32 %v1413, 2147483648
        %v1451 = vxor.u32 %v1442, 2147483648
        %v1452 = vmul.f32 %v1444, 1.442695
        %v1453 = vpow.pop %v1452
        %v1454 = vmul.f32 %v1445, 1.442695
        %v1455 = vpow.pop %v1454
        %v1456 = vmul.f32 %v1446, 1.442695
        %v1457 = vpow.pop %v1456
        %v1458 = vmul.f32 %v1447, 1.442695
        %v1459 = vpow.pop %v1458
        %v1460 = vmul.f32 %v1448, 1.442695
        %v1461 = vpow.pop %v1460
        %v1462 = vmul.f32 %v1449, 1.442695
        %v1463 = vpow.pop %v1462
        %v1464 = vmul.f32 %v1450, 1.442695
        %v1465 = vpow.pop %v1464
        %v1466 = vmul.f32 %v1451, 1.442695
        %v1467 = vpow.pop %v1466
        %v1468 = vadd.f32 %v1453, 1.0
        %v1469 = vadd.f32 %v1455, 1.0
        %v1470 = vadd.f32 %v1457, 1.0
        %v1471 = vadd.f32 %v1459, 1.0
        %v1472 = vadd.f32 %v1461, 1.0
        %v1473 = vadd.f32 %v1463, 1.0
        %v1474 = vadd.f32 %v1465, 1.0
        %v1475 = vadd.f32 %v1467, 1.0
        %v1476 = vrcp.pop %v1468
        %v1477 = vmul.f32 %v1468, %v1476
        %v1478 = vsub.f32 1.0, %v1477
        %v1479 = vmul.f32 %v1476, %v1478
        %v1480 = vadd.f32 %v1476, %v1479
        %vm1481 = vweird.f32 %v1468
        %vm1482 = vweird.f32 %v1476
        %vm1483 = vmor %vm1481, %vm1482
        %v1484 = vsel %vm1483, %v1476, %v1480
        %v1485 = vand.u32 2147483647, %v1468
        %vm1486 = vcmp.eq.f32.partialorder %v1485, 8.507059e+37
        %v1487 = vand.u32 %v1468, 2147483648
        %v1488 = vor.u32 1.1754944e-38, %v1487
        %v1489 = vsel %vm1486, %v1488, %v1484
        %v1490 = vmul.f32 1.0, %v1489
        %v1491 = vrcp.pop %v1469
        %v1492 = vmul.f32 %v1469, %v1491
        %v1493 = vsub.f32 1.0, %v1492
        %v1494 = vmul.f32 %v1491, %v1493
        %v1495 = vadd.f32 %v1491, %v1494
        %vm1496 = vweird.f32 %v1469
        %vm1497 = vweird.f32 %v1491
        %vm1498 = vmor %vm1496, %vm1497
        %v1499 = vsel %vm1498, %v1491, %v1495
        %v1500 = vand.u32 2147483647, %v1469
        %vm1501 = vcmp.eq.f32.partialorder %v1500, 8.507059e+37
        %v1502 = vand.u32 %v1469, 2147483648
        %v1503 = vor.u32 1.1754944e-38, %v1502
        %v1504 = vsel %vm1501, %v1503, %v1499
        %v1505 = vmul.f32 1.0, %v1504
        %v1506 = vrcp.pop %v1470
        %v1507 = vmul.f32 %v1470, %v1506
        %v1508 = vsub.f32 1.0, %v1507
        %v1509 = vmul.f32 %v1506, %v1508
        %v1510 = vadd.f32 %v1506, %v1509
        %vm1511 = vweird.f32 %v1470
        %vm1512 = vweird.f32 %v1506
        %vm1513 = vmor %vm1511, %vm1512
        %v1514 = vsel %vm1513, %v1506, %v1510
        %v1515 = vand.u32 2147483647, %v1470
        %vm1516 = vcmp.eq.f32.partialorder %v1515, 8.507059e+37
        %v1517 = vand.u32 %v1470, 2147483648
        %v1518 = vor.u32 1.1754944e-38, %v1517
        %v1519 = vsel %vm1516, %v1518, %v1514
        %v1520 = vmul.f32 1.0, %v1519
        %v1521 = vrcp.pop %v1471
        %v1522 = vmul.f32 %v1471, %v1521
        %v1523 = vsub.f32 1.0, %v1522
        %v1524 = vmul.f32 %v1521, %v1523
        %v1525 = vadd.f32 %v1521, %v1524
        %vm1526 = vweird.f32 %v1471
        %vm1527 = vweird.f32 %v1521
        %vm1528 = vmor %vm1526, %vm1527
        %v1529 = vsel %vm1528, %v1521, %v1525
        %v1530 = vand.u32 2147483647, %v1471
        %vm1531 = vcmp.eq.f32.partialorder %v1530, 8.507059e+37
        %v1532 = vand.u32 %v1471, 2147483648
        %v1533 = vor.u32 1.1754944e-38, %v1532
        %v1534 = vsel %vm1531, %v1533, %v1529
        %v1535 = vmul.f32 1.0, %v1534
        %v1536 = vrcp.pop %v1472
        %v1537 = vmul.f32 %v1472, %v1536
        %v1538 = vsub.f32 1.0, %v1537
        %v1539 = vmul.f32 %v1536, %v1538
        %v1540 = vadd.f32 %v1536, %v1539
        %vm1541 = vweird.f32 %v1472
        %vm1542 = vweird.f32 %v1536
        %vm1543 = vmor %vm1541, %vm1542
        %v1544 = vsel %vm1543, %v1536, %v1540
        %v1545 = vand.u32 2147483647, %v1472
        %vm1546 = vcmp.eq.f32.partialorder %v1545, 8.507059e+37
        %v1547 = vand.u32 %v1472, 2147483648
        %v1548 = vor.u32 1.1754944e-38, %v1547
        %v1549 = vsel %vm1546, %v1548, %v1544
        %v1550 = vmul.f32 1.0, %v1549
        %v1551 = vrcp.pop %v1473
        %v1552 = vmul.f32 %v1473, %v1551
        %v1553 = vsub.f32 1.0, %v1552
        %v1554 = vmul.f32 %v1551, %v1553
        %v1555 = vadd.f32 %v1551, %v1554
        %vm1556 = vweird.f32 %v1473
        %vm1557 = vweird.f32 %v1551
        %vm1558 = vmor %vm1556, %vm1557
        %v1559 = vsel %vm1558, %v1551, %v1555
        %v1560 = vand.u32 2147483647, %v1473
        %vm1561 = vcmp.eq.f32.partialorder %v1560, 8.507059e+37
        %v1562 = vand.u32 %v1473, 2147483648
        %v1563 = vor.u32 1.1754944e-38, %v1562
        %v1564 = vsel %vm1561, %v1563, %v1559
        %v1565 = vmul.f32 1.0, %v1564
        %v1566 = vrcp.pop %v1474
        %v1567 = vmul.f32 %v1474, %v1566
        %v1568 = vsub.f32 1.0, %v1567
        %v1569 = vmul.f32 %v1566, %v1568
        %v1570 = vadd.f32 %v1566, %v1569
        %vm1571 = vweird.f32 %v1474
        %vm1572 = vweird.f32 %v1566
        %vm1573 = vmor %vm1571, %vm1572
        %v1574 = vsel %vm1573, %v1566, %v1570
        %v1575 = vand.u32 2147483647, %v1474
        %vm1576 = vcmp.eq.f32.partialorder %v1575, 8.507059e+37
        %v1577 = vand.u32 %v1474, 2147483648
        %v1578 = vor.u32 1.1754944e-38, %v1577
        %v1579 = vsel %vm1576, %v1578, %v1574
        %v1580 = vmul.f32 1.0, %v1579
        %v1581 = vrcp.pop %v1475
        %v1582 = vmul.f32 %v1475, %v1581
        %v1583 = vsub.f32 1.0, %v1582
        %v1584 = vmul.f32 %v1581, %v1583
        %v1585 = vadd.f32 %v1581, %v1584
        %vm1586 = vweird.f32 %v1475
        %vm1587 = vweird.f32 %v1581
        %vm1588 = vmor %vm1586, %vm1587
        %v1589 = vsel %vm1588, %v1581, %v1585
        %v1590 = vand.u32 2147483647, %v1475
        %vm1591 = vcmp.eq.f32.partialorder %v1590, 8.507059e+37
        %v1592 = vand.u32 %v1475, 2147483648
        %v1593 = vor.u32 1.1754944e-38, %v1592
        %v1594 = vsel %vm1591, %v1593, %v1589
        %v1595 = vmul.f32 1.0, %v1594
        %v1596 = vmul.f32 %v1396, %v1490
        %v1597 = vmul.f32 %v1425, %v1505
        %v1598 = vmul.f32 %v1398, %v1520
        %v1599 = vmul.f32 %v1427, %v1535
        %v1600 = vmul.f32 %v1401, %v1550
        %v1601 = vmul.f32 %v1430, %v1565
        %v1602 = vmul.f32 %v1403, %v1580
        %v1603 = vmul.f32 %v1432, %v1595
        %1604 = vst [vmem:[%s424] sm:$0xff] %v1596
        %1605 = vst [vmem:[%s424 + $0x8] sm:$0xff] %v1597
        %1606 = vst [vmem:[%s424 + $0x10] sm:$0xff] %v1598
        %1607 = vst [vmem:[%s424 + $0x18] sm:$0xff] %v1599
        %1608 = vst [vmem:[%s424 + $0x20] sm:$0xff] %v1600
        %1609 = vst [vmem:[%s424 + $0x28] sm:$0xff] %v1601
        %1610 = vst [vmem:[%s424 + $0x30] sm:$0xff] %v1602
        %1611 = vst [vmem:[%s424 + $0x38] sm:$0xff] %v1603
        %s1612 = sand.u32 %s288, 1
        %s1613 = scalar_lea.sflag [#allocation4], %s1612
        %s1614 = sand.u32 %s288, 1
        %s1615 = smul.addr %s1614, 64
        %s1616 = scalar_lea.vmem [#allocation5], %s1615
        // Predicated region
        $region69: #{tpu_custom_call.1} parent=63 // pred_check
          %p1617 = pneg %p298
        $region70: #{tpu_custom_call.1} parent=63 // pred_check_branch
          %1619 = sbr.rel (%p1617) target = $region72
        $region71: #{tpu_custom_call.1} parent=63 // pred_region
          %s1620 = smul.u32 2, %s33
          %1622 = vsyncadd %s1613, 0
          %s1623 = smul.addr %s32, 8
          %s1624 = sadd.s32 %s1620, %s1623
          %s1625 = smul.addr %s1624, 8
          %s1626 = scalar_lea.hbm %s11, %s1625
          %s1627 = sshll.u32 %s1616, 4
          %s1628 = int_to_ptr.vmem [resolvable:$true] %s1627
          %s1629 = sshll.u32 %s1626, 4
          %s1630 = int_to_ptr.hbm [resolvable:$true] %s1629
          %1635 = dma.vmem_to_hbm [thread:$0]  %s1628, 1024, %s1630, %s1613, 256, 256, 16
        $region72: #{tpu_custom_call.1} parent=63 // pred_fallthru
          _
      $region64: #{tpu_custom_call.1} parent=5 // pred_fallthru
        _
      %p1636 = scmp.le.s32.totalorder 2, %s23
      // Predicated region
      $region73: #{tpu_custom_call.1} parent=5 // pred_check
        %p1637 = pneg %p1636
      $region74: #{tpu_custom_call.1} parent=5 // pred_check_branch
        %1639 = sbr.rel (%p1637) target = $region76
      $region75: #{tpu_custom_call.1} parent=5 // pred_region
        %s1640 = ssub.s32 %s23, 2
        // Predicated region
        $region77: #{tpu_custom_call.1} parent=75 // pred_check
          %p1641 = pneg %p304
        $region78: #{tpu_custom_call.1} parent=75 // pred_check_branch
          %1643 = sbr.rel (%p1641) target = $region80
        $region79: #{tpu_custom_call.1} parent=75 // pred_region
          %s1644 = sand.u32 %s289, 1
          %s1645 = scalar_lea.sflag [#allocation4], %s1644
          %s1646 = sand.u32 %s289, 1
          %s1647 = smul.addr %s1646, 64
          %s1648 = scalar_lea.vmem [#allocation5], %s1647
          %1650 = dma.done %s1645, 1024
        $region80: #{tpu_custom_call.1} parent=75 // pred_fallthru
          _
      $region76: #{tpu_custom_call.1} parent=5 // pred_fallthru
        _
    $region6: #{tpu_custom_call.1} parent=1 // loop_footer
      %s27 = sadd.s32 1, %s23
    $region7: #{tpu_custom_call.1} parent=1 // loop_footer_branch
      %22 = sbr.rel target = $region3
    $region8: #{tpu_custom_call.1} parent=1 // loop_exit
      _
    %1651 = vsyncpa [#allocation3], 1
    %s1652 = scalar_lea.sflag [#allocation3], 1
    %1653 = vsyncpa %s1652, 1
    %1654 = vsyncpa [#allocation4], 1
    %s1655 = scalar_lea.sflag [#allocation4], 1
    %1656 = vsyncpa %s1655, 1

</llo_original>
